<compile_context>
chip_gen: v6e
topology: v6e:2x2x1
jax: 0.10.0
libtpu: 0.0.40
codegen_flags: <defaults>
</compile_context>

<pallas_src>
import functools

import jax
import jax.numpy as jnp
from jax.experimental import pallas as pl
from jax.experimental.pallas import tpu as pltpu


# ----------------------------------------------------------------------------
# Pallas kernel: one grid step == `batch_tile` batch elements, fully in VMEM.
# ----------------------------------------------------------------------------
def critic_q_kernel(state_ref, action_ref,
                    wbig_ref, bbig_ref, w1act_ref, w1attn_ref,
                    w2_ref, b2_ref, w3t_ref, b3_ref,
                    out_ref, *, num_heads, kv_dim, hidden):
    bt, S, q_dim = state_ref.shape
    hk = num_heads * kv_dim
    rows = bt * S
    scale = 1.0 / jnp.sqrt(jnp.float32(kv_dim))

    # Flatten the batch tile into the row (sublane) axis: one big matmul per
    # projection instead of `bt` tiny ones.
    s_flat = state_ref[...].reshape(rows, q_dim)                 # (rows, q_dim)
    a_flat = action_ref[...].reshape(rows, action_ref.shape[-1])  # (rows, 2)

    # Fused MXU push: w_big = [w1_state | Wq | Wk | Wv]  (q_dim, hidden + 3*HK)
    #   lanes [0, hidden)            -> layer-1 state contribution (+ b1)
    #   lanes [hidden, hidden+3*HK)  -> QKV projections (+ their biases)
    proj = (jnp.dot(s_flat, wbig_ref[...], preferred_element_type=jnp.float32)
            + bbig_ref[...])                                     # (rows, hidden+3*HK)

    pre = proj[:, :hidden] + jnp.dot(a_flat, w1act_ref[...],
                                     preferred_element_type=jnp.float32)
    qkv = proj[:, hidden:].reshape(bt, S, 3 * hk)                # (bt, S, 3*HK)

    w1_attn = w1attn_ref[...]                                    # (HK, hidden)
    for h in range(num_heads):                                   # static head loop
        lo = h * kv_dim
        qh = qkv[:, :, lo:lo + kv_dim]                           # (bt, S, kv)
        kh = qkv[:, :, hk + lo:hk + lo + kv_dim]
        vh = qkv[:, :, 2 * hk + lo:2 * hk + lo + kv_dim]

        # Batched over the batch tile; contracts last dims (no explicit .T).
        scores = jnp.einsum('bqd,bkd->bqk', qh, kh,
                            preferred_element_type=jnp.float32) * scale
        scores = scores - jnp.max(scores, axis=-1, keepdims=True)
        p = jnp.exp(scores)
        p = p * pl.reciprocal(jnp.sum(p, axis=-1, keepdims=True), approx=True)
        head_out = jnp.einsum('bqk,bkd->bqd', p, vh,
                              preferred_element_type=jnp.float32)  # (bt, S, kv)

        # Accumulate this head's slice of W1 directly (no head concat).
        pre = pre + jnp.dot(head_out.reshape(rows, kv_dim),
                            w1_attn[lo:lo + kv_dim, :],
                            preferred_element_type=jnp.float32)

    h1 = jnp.maximum(pre, 0.0)                                   # (rows, hidden)
    h2 = jnp.maximum(jnp.dot(h1, w2_ref[...],
                             preferred_element_type=jnp.float32) + b2_ref[...],
                     0.0)                                        # (rows, hidden)

    # Final Linear(256 -> 1) as a VPU multiply + XLU lane reduction; output
    # block is (1, batch_tile, S) — never materializes a 1-wide column.
    out_mat = jnp.sum(h2.reshape(bt, S, hidden) * w3t_ref[...], axis=-1) \
        + b3_ref[0, 0]                                           # (bt, S)
    out_ref[0] = out_mat


# ----------------------------------------------------------------------------
# Wrapper
# ----------------------------------------------------------------------------
def transformer_test_q(state, action, params, *, num_heads, kv_dim,
                       batch_tile=None, hidden=256):
    B, S, q_dim = state.shape
    HK = num_heads * kv_dim

    wq, bq, wk, bk, wv, bv, w1, b1, w2, b2, w3, b3 = params

    # One-time wrapper-side weight packing (layout plumbing, not compute):
    #   w_big = [w1_state | Wq | Wk | Wv]  so the layer-1 state part and the
    #   QKV projections come out of a single matmul; the 256-wide part is
    #   first so both in-kernel lane slices start at 128-aligned offsets.
    wqkv = jnp.concatenate([wq, wk, wv], axis=1)                 # (q_dim, 3*HK)
    bqkv = jnp.concatenate([bq, bk, bv], axis=1)                 # (1, 3*HK)
    w1_attn = w1[:HK]                                            # (HK, 256)
    w1_state = w1[HK:HK + q_dim]                                 # (q_dim, 256)
    w1_act = w1[HK + q_dim:]                                     # (2, 256)
    w_big = jnp.concatenate([w1_state, wqkv], axis=1)            # (q_dim, 256+3HK)
    b_big = jnp.concatenate([b1, bqkv], axis=1)                  # (1, 256+3HK)
    w3t = w3.T                                                   # (1, 256)

    # Batch tile: keep >= 2 grid steps when possible so v7x's two TensorCores
    # both get work ("parallel" axis); otherwise process the whole batch.
    if batch_tile is None:
        batch_tile = B // 2 if (B % 2 == 0 and B >= 2) else B
    assert B % batch_tile == 0
    num_steps = B // batch_tile

    def const_spec(shape):
        # Whole-array block, constant across the grid (weights stay resident).
        return pl.BlockSpec(shape, lambda i, _n=len(shape): (0,) * _n)

    kernel = functools.partial(critic_q_kernel, num_heads=num_heads,
                               kv_dim=kv_dim, hidden=hidden)

    out = pl.pallas_call(
        kernel,
        out_shape=jax.ShapeDtypeStruct((num_steps, batch_tile, S), jnp.float32),
        grid=(num_steps,),
        in_specs=[
            pl.BlockSpec((batch_tile, S, q_dim), lambda i: (i, 0, 0)),  # state
            pl.BlockSpec((batch_tile, S, 2),     lambda i: (i, 0, 0)),  # action
            const_spec((q_dim, hidden + 3 * HK)),                       # w_big
            const_spec((1, hidden + 3 * HK)),                           # b_big
            const_spec((2, hidden)),                                    # w1_act
            const_spec((HK, hidden)),                                   # w1_attn
            const_spec((hidden, hidden)),                               # w2
            const_spec((1, hidden)),                                    # b2
            const_spec((1, hidden)),                                    # w3.T
            const_spec((1, 1)),                                         # b3
        ],
        out_specs=pl.BlockSpec((1, batch_tile, S), lambda i: (i, 0, 0)),
        compiler_params=pltpu.CompilerParams(dimension_semantics=("parallel",)),
    )(state, action, w_big, b_big, w1_act, w1_attn, w2, b2, w3t, b3)

    # (num_steps, batch_tile, S) -> (B, S, 1) to match the PyTorch module.
    return out.reshape(B, S, 1)


# ----------------------------------------------------------------------------
# Deterministic parameter initialization (mirrors nn.Linear defaults + the
# init_layer_uniform(-0.003, 0.003) applied to the output layer).
# ----------------------------------------------------------------------------
def init_params(key, q_dim, kv_dim, num_heads):
    HK = num_heads * kv_dim
    in_dim = HK + q_dim + 2

    def linear(key, fan_in, fan_out, init_w=None):
        kw, kb = jax.random.split(key)
        bound = init_w if init_w is not None else 1.0 / jnp.sqrt(jnp.float32(fan_in))
        w = jax.random.uniform(kw, (fan_in, fan_out), jnp.float32, -bound, bound)
        b = jax.random.uniform(kb, (1, fan_out), jnp.float32, -bound, bound)
        return w, b

    ks = jax.random.split(key, 6)
    wq, bq = linear(ks[0], q_dim, HK)
    wk, bk = linear(ks[1], q_dim, HK)
    wv, bv = linear(ks[2], q_dim, HK)
    w1, b1 = linear(ks[3], in_dim, 256)
    w2, b2 = linear(ks[4], 256, 256)
    w3, b3 = linear(ks[5], 256, 1, init_w=0.003)
    return (wq, bq, wk, bk, wv, bv, w1, b1, w2, b2, w3, b3)


# ----------------------------------------------------------------------------
# Pure-JAX reference (same math) for a silent correctness check.
# ----------------------------------------------------------------------------
def reference(state, action, params, *, num_heads, kv_dim):
    wq, bq, wk, bk, wv, bv, w1, b1, w2, b2, w3, b3 = params
    q = state @ wq + bq
    k = state @ wk + bk
    v = state @ wv + bv
    B, S, _ = state.shape
    qh = q.reshape(B, S, num_heads, kv_dim).transpose(0, 2, 1, 3)
    kh = k.reshape(B, S, num_heads, kv_dim).transpose(0, 2, 1, 3)
    vh = v.reshape(B, S, num_heads, kv_dim).transpose(0, 2, 1, 3)
    scores = jnp.einsum("bhqd,bhkd->bhqk", qh, kh) / jnp.sqrt(jnp.float32(kv_dim))
    p = jax.nn.softmax(scores, axis=-1)
    attn = jnp.einsum("bhqk,bhkd->bhqd", p, vh).transpose(0, 2, 1, 3).reshape(B, S, -1)
    x = jnp.concatenate([attn, state, action], axis=-1)
    x = jnp.maximum(x @ w1 + b1, 0.0)
    x = jnp.maximum(x @ w2 + b2, 0.0)
    return x @ w3 + b3


if __name__ == "__main__":
    B, S = 2, 8
    q_dim, kv_dim, num_heads = 8, 8, 3

    key = jax.random.PRNGKey(0)
    k_state, k_action, k_params = jax.random.split(key, 3)

    state = jax.random.normal(k_state, (B, S, q_dim), jnp.float32)
    action = jax.random.normal(k_action, (B, S, 2), jnp.float32)
    params = init_params(k_params, q_dim, kv_dim, num_heads)

    out = transformer_test_q(state, action, params,
                             num_heads=num_heads, kv_dim=kv_dim)
    out = jax.block_until_ready(out)

    ref = reference(state, action, params, num_heads=num_heads, kv_dim=kv_dim)
    assert out.shape == (B, S, 1)
    # tolerance loosened slightly because the softmax uses the EUP approximate
    # reciprocal (pl.reciprocal(approx=True)).
    assert jnp.allclose(out, ref, atol=1e-3, rtol=1e-3), float(jnp.max(jnp.abs(out - ref)))

    print("KERNEL_OK")
</pallas_src>

<mosaic_0001>
module attributes {stable_mosaic.version = 11 : i64} {
  func.func @critic_q_kernel(%arg0: i32, %arg1: memref<1x8x8xf32, #tpu.memory_space<vmem>>, %arg2: memref<1x8x2xf32, #tpu.memory_space<vmem>>, %arg3: memref<8x328xf32, #tpu.memory_space<vmem>>, %arg4: memref<1x328xf32, #tpu.memory_space<vmem>>, %arg5: memref<2x256xf32, #tpu.memory_space<vmem>>, %arg6: memref<24x256xf32, #tpu.memory_space<vmem>>, %arg7: memref<256x256xf32, #tpu.memory_space<vmem>>, %arg8: memref<1x256xf32, #tpu.memory_space<vmem>>, %arg9: memref<1x256xf32, #tpu.memory_space<vmem>>, %arg10: memref<1x1xf32, #tpu.memory_space<vmem>>, %arg11: memref<1x1x8xf32, #tpu.memory_space<vmem>>) attributes {dimension_semantics = [#tpu.dimension_semantics<parallel>], iteration_bounds = array<i64: 2>, scalar_prefetch = 0 : i64, scratch_operands = 0 : i64, tpu.core_type = #tpu.core_type<tc>, window_params = [{transform_indices = @transform_0, window_bounds = array<i64: 1, 8, 8>}, {transform_indices = @transform_1, window_bounds = array<i64: 1, 8, 2>}, {pipeline_mode = #tpu.pipeline_mode<synchronous>, transform_indices = @transform_2, window_bounds = array<i64: 8, 328>}, {pipeline_mode = #tpu.pipeline_mode<synchronous>, transform_indices = @transform_3, window_bounds = array<i64: 1, 328>}, {pipeline_mode = #tpu.pipeline_mode<synchronous>, transform_indices = @transform_4, window_bounds = array<i64: 2, 256>}, {pipeline_mode = #tpu.pipeline_mode<synchronous>, transform_indices = @transform_5, window_bounds = array<i64: 24, 256>}, {pipeline_mode = #tpu.pipeline_mode<synchronous>, transform_indices = @transform_6, window_bounds = array<i64: 256, 256>}, {pipeline_mode = #tpu.pipeline_mode<synchronous>, transform_indices = @transform_7, window_bounds = array<i64: 1, 256>}, {pipeline_mode = #tpu.pipeline_mode<synchronous>, transform_indices = @transform_8, window_bounds = array<i64: 1, 256>}, {pipeline_mode = #tpu.pipeline_mode<synchronous>, transform_indices = @transform_9, window_bounds = array<i64: 1, 1>}, {transform_indices = @transform_10, window_bounds = array<i64: 1, 1, 8>}]} {
    %cst = arith.constant 8.000000e+00 : f32
    %0 = math.sqrt %cst : f32
    %cst_0 = arith.constant 1.000000e+00 : f32
    %1 = arith.divf %cst_0, %0 : f32
    %c0 = arith.constant 0 : index
    %c0_1 = arith.constant 0 : index
    %c0_2 = arith.constant 0 : index
    %2 = vector.load %arg1[%c0, %c0_1, %c0_2] : memref<1x8x8xf32, #tpu.memory_space<vmem>>, vector<1x8x8xf32>
    %3 = vector.shape_cast %2 : vector<1x8x8xf32> to vector<8x8xf32>
    %c0_3 = arith.constant 0 : index
    %c0_4 = arith.constant 0 : index
    %c0_5 = arith.constant 0 : index
    %4 = vector.load %arg2[%c0_3, %c0_4, %c0_5] : memref<1x8x2xf32, #tpu.memory_space<vmem>>, vector<1x8x2xf32>
    %5 = vector.shape_cast %4 : vector<1x8x2xf32> to vector<8x2xf32>
    %c0_6 = arith.constant 0 : index
    %c0_7 = arith.constant 0 : index
    %6 = vector.load %arg3[%c0_6, %c0_7] : memref<8x328xf32, #tpu.memory_space<vmem>>, vector<8x328xf32>
    %cst_8 = arith.constant dense<0.000000e+00> : vector<8x328xf32>
    %7 = tpu.matmul %3, %6, %cst_8 {dimension_numbers = #tpu.dot_dimension_numbers<[1], [0], [0], [1], [0, 0, 1, 1], [], []>} : vector<8x8xf32>, vector<8x328xf32>, vector<8x328xf32> -> vector<8x328xf32>
    %c0_9 = arith.constant 0 : index
    %c0_10 = arith.constant 0 : index
    %8 = vector.load %arg4[%c0_9, %c0_10] : memref<1x328xf32, #tpu.memory_space<vmem>>, vector<1x328xf32>
    %9 = vector.broadcast %8 : vector<1x328xf32> to vector<8x328xf32>
    %10 = arith.addf %7, %9 : vector<8x328xf32>
    %11 = vector.extract_strided_slice %10 {offsets = [0, 0], sizes = [8, 256], strides = [1, 1]} : vector<8x328xf32> to vector<8x256xf32>
    %c0_11 = arith.constant 0 : index
    %c0_12 = arith.constant 0 : index
    %12 = vector.load %arg5[%c0_11, %c0_12] : memref<2x256xf32, #tpu.memory_space<vmem>>, vector<2x256xf32>
    %cst_13 = arith.constant dense<0.000000e+00> : vector<8x256xf32>
    %13 = tpu.matmul %5, %12, %cst_13 {dimension_numbers = #tpu.dot_dimension_numbers<[1], [0], [0], [1], [0, 0, 1, 1], [], []>} : vector<8x2xf32>, vector<2x256xf32>, vector<8x256xf32> -> vector<8x256xf32>
    %14 = arith.addf %11, %13 : vector<8x256xf32>
    %15 = vector.extract_strided_slice %10 {offsets = [0, 256], sizes = [8, 72], strides = [1, 1]} : vector<8x328xf32> to vector<8x72xf32>
    %16 = vector.shape_cast %15 : vector<8x72xf32> to vector<1x8x72xf32>
    %c0_14 = arith.constant 0 : index
    %c0_15 = arith.constant 0 : index
    %17 = vector.load %arg6[%c0_14, %c0_15] : memref<24x256xf32, #tpu.memory_space<vmem>>, vector<24x256xf32>
    %18 = vector.extract_strided_slice %16 {offsets = [0, 0, 0], sizes = [1, 8, 8], strides = [1, 1, 1]} : vector<1x8x72xf32> to vector<1x8x8xf32>
    %19 = vector.extract_strided_slice %16 {offsets = [0, 0, 24], sizes = [1, 8, 8], strides = [1, 1, 1]} : vector<1x8x72xf32> to vector<1x8x8xf32>
    %20 = vector.extract_strided_slice %16 {offsets = [0, 0, 48], sizes = [1, 8, 8], strides = [1, 1, 1]} : vector<1x8x72xf32> to vector<1x8x8xf32>
    "tpu.trace_start"() <{level = 10 : i32, message = "bqd,bkd->bqk"}> : () -> ()
    %cst_16 = arith.constant dense<0.000000e+00> : vector<1x8x8xf32>
    %21 = tpu.matmul %18, %19, %cst_16 {dimension_numbers = #tpu.dot_dimension_numbers<[2], [2], [1], [1], [0, 0, 0, 1, 1, 1], [0], [0]>} : vector<1x8x8xf32>, vector<1x8x8xf32>, vector<1x8x8xf32> -> vector<1x8x8xf32>
    "tpu.trace_stop"() : () -> ()
    %22 = vector.broadcast %1 : f32 to vector<1x8x8xf32>
    %23 = arith.mulf %21, %22 : vector<1x8x8xf32>
    %cst_17 = arith.constant dense<0xFF800000> : vector<1x8xf32>
    %24 = vector.multi_reduction <maximumf>, %23, %cst_17 [2] : vector<1x8x8xf32> to vector<1x8xf32>
    %25 = vector.shape_cast %24 : vector<1x8xf32> to vector<1x8x1xf32>
    %26 = vector.broadcast %25 : vector<1x8x1xf32> to vector<1x8x8xf32>
    %27 = arith.subf %23, %26 : vector<1x8x8xf32>
    %28 = math.exp %27 : vector<1x8x8xf32>
    %cst_18 = arith.constant dense<0.000000e+00> : vector<1x8xf32>
    %29 = vector.multi_reduction <add>, %28, %cst_18 [2] : vector<1x8x8xf32> to vector<1x8xf32>
    %30 = vector.shape_cast %29 : vector<1x8xf32> to vector<1x8x1xf32>
    %31 = tpu.reciprocal %30 {approx = true} : vector<1x8x1xf32> -> vector<1x8x1xf32>
    %32 = vector.broadcast %31 : vector<1x8x1xf32> to vector<1x8x8xf32>
    %33 = arith.mulf %28, %32 : vector<1x8x8xf32>
    "tpu.trace_start"() <{level = 10 : i32, message = "bqk,bkd->bqd"}> : () -> ()
    %cst_19 = arith.constant dense<0.000000e+00> : vector<1x8x8xf32>
    %34 = tpu.matmul %33, %20, %cst_19 {dimension_numbers = #tpu.dot_dimension_numbers<[2], [1], [1], [2], [0, 0, 0, 1, 1, 2], [0], [0]>} : vector<1x8x8xf32>, vector<1x8x8xf32>, vector<1x8x8xf32> -> vector<1x8x8xf32>
    "tpu.trace_stop"() : () -> ()
    %35 = vector.shape_cast %34 : vector<1x8x8xf32> to vector<8x8xf32>
    %36 = vector.extract_strided_slice %17 {offsets = [0, 0], sizes = [8, 256], strides = [1, 1]} : vector<24x256xf32> to vector<8x256xf32>
    %cst_20 = arith.constant dense<0.000000e+00> : vector<8x256xf32>
    %37 = tpu.matmul %35, %36, %cst_20 {dimension_numbers = #tpu.dot_dimension_numbers<[1], [0], [0], [1], [0, 0, 1, 1], [], []>} : vector<8x8xf32>, vector<8x256xf32>, vector<8x256xf32> -> vector<8x256xf32>
    %38 = arith.addf %14, %37 : vector<8x256xf32>
    %39 = vector.extract_strided_slice %16 {offsets = [0, 0, 8], sizes = [1, 8, 8], strides = [1, 1, 1]} : vector<1x8x72xf32> to vector<1x8x8xf32>
    %40 = vector.extract_strided_slice %16 {offsets = [0, 0, 32], sizes = [1, 8, 8], strides = [1, 1, 1]} : vector<1x8x72xf32> to vector<1x8x8xf32>
    %41 = vector.extract_strided_slice %16 {offsets = [0, 0, 56], sizes = [1, 8, 8], strides = [1, 1, 1]} : vector<1x8x72xf32> to vector<1x8x8xf32>
    "tpu.trace_start"() <{level = 10 : i32, message = "bqd,bkd->bqk"}> : () -> ()
    %cst_21 = arith.constant dense<0.000000e+00> : vector<1x8x8xf32>
    %42 = tpu.matmul %39, %40, %cst_21 {dimension_numbers = #tpu.dot_dimension_numbers<[2], [2], [1], [1], [0, 0, 0, 1, 1, 1], [0], [0]>} : vector<1x8x8xf32>, vector<1x8x8xf32>, vector<1x8x8xf32> -> vector<1x8x8xf32>
    "tpu.trace_stop"() : () -> ()
    %43 = vector.broadcast %1 : f32 to vector<1x8x8xf32>
    %44 = arith.mulf %42, %43 : vector<1x8x8xf32>
    %cst_22 = arith.constant dense<0xFF800000> : vector<1x8xf32>
    %45 = vector.multi_reduction <maximumf>, %44, %cst_22 [2] : vector<1x8x8xf32> to vector<1x8xf32>
    %46 = vector.shape_cast %45 : vector<1x8xf32> to vector<1x8x1xf32>
    %47 = vector.broadcast %46 : vector<1x8x1xf32> to vector<1x8x8xf32>
    %48 = arith.subf %44, %47 : vector<1x8x8xf32>
    %49 = math.exp %48 : vector<1x8x8xf32>
    %cst_23 = arith.constant dense<0.000000e+00> : vector<1x8xf32>
    %50 = vector.multi_reduction <add>, %49, %cst_23 [2] : vector<1x8x8xf32> to vector<1x8xf32>
    %51 = vector.shape_cast %50 : vector<1x8xf32> to vector<1x8x1xf32>
    %52 = tpu.reciprocal %51 {approx = true} : vector<1x8x1xf32> -> vector<1x8x1xf32>
    %53 = vector.broadcast %52 : vector<1x8x1xf32> to vector<1x8x8xf32>
    %54 = arith.mulf %49, %53 : vector<1x8x8xf32>
    "tpu.trace_start"() <{level = 10 : i32, message = "bqk,bkd->bqd"}> : () -> ()
    %cst_24 = arith.constant dense<0.000000e+00> : vector<1x8x8xf32>
    %55 = tpu.matmul %54, %41, %cst_24 {dimension_numbers = #tpu.dot_dimension_numbers<[2], [1], [1], [2], [0, 0, 0, 1, 1, 2], [0], [0]>} : vector<1x8x8xf32>, vector<1x8x8xf32>, vector<1x8x8xf32> -> vector<1x8x8xf32>
    "tpu.trace_stop"() : () -> ()
    %56 = vector.shape_cast %55 : vector<1x8x8xf32> to vector<8x8xf32>
    %57 = vector.extract_strided_slice %17 {offsets = [8, 0], sizes = [8, 256], strides = [1, 1]} : vector<24x256xf32> to vector<8x256xf32>
    %cst_25 = arith.constant dense<0.000000e+00> : vector<8x256xf32>
    %58 = tpu.matmul %56, %57, %cst_25 {dimension_numbers = #tpu.dot_dimension_numbers<[1], [0], [0], [1], [0, 0, 1, 1], [], []>} : vector<8x8xf32>, vector<8x256xf32>, vector<8x256xf32> -> vector<8x256xf32>
    %59 = arith.addf %38, %58 : vector<8x256xf32>
    %60 = vector.extract_strided_slice %16 {offsets = [0, 0, 16], sizes = [1, 8, 8], strides = [1, 1, 1]} : vector<1x8x72xf32> to vector<1x8x8xf32>
    %61 = vector.extract_strided_slice %16 {offsets = [0, 0, 40], sizes = [1, 8, 8], strides = [1, 1, 1]} : vector<1x8x72xf32> to vector<1x8x8xf32>
    %62 = vector.extract_strided_slice %16 {offsets = [0, 0, 64], sizes = [1, 8, 8], strides = [1, 1, 1]} : vector<1x8x72xf32> to vector<1x8x8xf32>
    "tpu.trace_start"() <{level = 10 : i32, message = "bqd,bkd->bqk"}> : () -> ()
    %cst_26 = arith.constant dense<0.000000e+00> : vector<1x8x8xf32>
    %63 = tpu.matmul %60, %61, %cst_26 {dimension_numbers = #tpu.dot_dimension_numbers<[2], [2], [1], [1], [0, 0, 0, 1, 1, 1], [0], [0]>} : vector<1x8x8xf32>, vector<1x8x8xf32>, vector<1x8x8xf32> -> vector<1x8x8xf32>
    "tpu.trace_stop"() : () -> ()
    %64 = vector.broadcast %1 : f32 to vector<1x8x8xf32>
    %65 = arith.mulf %63, %64 : vector<1x8x8xf32>
    %cst_27 = arith.constant dense<0xFF800000> : vector<1x8xf32>
    %66 = vector.multi_reduction <maximumf>, %65, %cst_27 [2] : vector<1x8x8xf32> to vector<1x8xf32>
    %67 = vector.shape_cast %66 : vector<1x8xf32> to vector<1x8x1xf32>
    %68 = vector.broadcast %67 : vector<1x8x1xf32> to vector<1x8x8xf32>
    %69 = arith.subf %65, %68 : vector<1x8x8xf32>
    %70 = math.exp %69 : vector<1x8x8xf32>
    %cst_28 = arith.constant dense<0.000000e+00> : vector<1x8xf32>
    %71 = vector.multi_reduction <add>, %70, %cst_28 [2] : vector<1x8x8xf32> to vector<1x8xf32>
    %72 = vector.shape_cast %71 : vector<1x8xf32> to vector<1x8x1xf32>
    %73 = tpu.reciprocal %72 {approx = true} : vector<1x8x1xf32> -> vector<1x8x1xf32>
    %74 = vector.broadcast %73 : vector<1x8x1xf32> to vector<1x8x8xf32>
    %75 = arith.mulf %70, %74 : vector<1x8x8xf32>
    "tpu.trace_start"() <{level = 10 : i32, message = "bqk,bkd->bqd"}> : () -> ()
    %cst_29 = arith.constant dense<0.000000e+00> : vector<1x8x8xf32>
    %76 = tpu.matmul %75, %62, %cst_29 {dimension_numbers = #tpu.dot_dimension_numbers<[2], [1], [1], [2], [0, 0, 0, 1, 1, 2], [0], [0]>} : vector<1x8x8xf32>, vector<1x8x8xf32>, vector<1x8x8xf32> -> vector<1x8x8xf32>
    "tpu.trace_stop"() : () -> ()
    %77 = vector.shape_cast %76 : vector<1x8x8xf32> to vector<8x8xf32>
    %78 = vector.extract_strided_slice %17 {offsets = [16, 0], sizes = [8, 256], strides = [1, 1]} : vector<24x256xf32> to vector<8x256xf32>
    %cst_30 = arith.constant dense<0.000000e+00> : vector<8x256xf32>
    %79 = tpu.matmul %77, %78, %cst_30 {dimension_numbers = #tpu.dot_dimension_numbers<[1], [0], [0], [1], [0, 0, 1, 1], [], []>} : vector<8x8xf32>, vector<8x256xf32>, vector<8x256xf32> -> vector<8x256xf32>
    %80 = arith.addf %59, %79 : vector<8x256xf32>
    %cst_31 = arith.constant 0.000000e+00 : f32
    %81 = vector.broadcast %cst_31 : f32 to vector<8x256xf32>
    %82 = arith.maximumf %80, %81 : vector<8x256xf32>
    %c0_32 = arith.constant 0 : index
    %c0_33 = arith.constant 0 : index
    %83 = vector.load %arg7[%c0_32, %c0_33] : memref<256x256xf32, #tpu.memory_space<vmem>>, vector<256x256xf32>
    %cst_34 = arith.constant dense<0.000000e+00> : vector<8x256xf32>
    %84 = tpu.matmul %82, %83, %cst_34 {dimension_numbers = #tpu.dot_dimension_numbers<[1], [0], [0], [1], [0, 0, 1, 1], [], []>} : vector<8x256xf32>, vector<256x256xf32>, vector<8x256xf32> -> vector<8x256xf32>
    %c0_35 = arith.constant 0 : index
    %c0_36 = arith.constant 0 : index
    %85 = vector.load %arg8[%c0_35, %c0_36] : memref<1x256xf32, #tpu.memory_space<vmem>>, vector<1x256xf32>
    %86 = vector.broadcast %85 : vector<1x256xf32> to vector<8x256xf32>
    %87 = arith.addf %84, %86 : vector<8x256xf32>
    %cst_37 = arith.constant 0.000000e+00 : f32
    %88 = vector.broadcast %cst_37 : f32 to vector<8x256xf32>
    %89 = arith.maximumf %87, %88 : vector<8x256xf32>
    %90 = vector.shape_cast %89 : vector<8x256xf32> to vector<1x8x256xf32>
    %c0_38 = arith.constant 0 : index
    %c0_39 = arith.constant 0 : index
    %91 = vector.load %arg9[%c0_38, %c0_39] : memref<1x256xf32, #tpu.memory_space<vmem>>, vector<1x256xf32>
    %92 = vector.shape_cast %91 : vector<1x256xf32> to vector<1x1x256xf32>
    %93 = vector.broadcast %92 : vector<1x1x256xf32> to vector<1x8x256xf32>
    %94 = arith.mulf %90, %93 : vector<1x8x256xf32>
    %cst_40 = arith.constant dense<0.000000e+00> : vector<1x8xf32>
    %95 = vector.multi_reduction <add>, %94, %cst_40 [2] : vector<1x8x256xf32> to vector<1x8xf32>
    %c0_41 = arith.constant 0 : index
    %c0_42 = arith.constant 0 : index
    %96 = vector.load %arg10[%c0_41, %c0_42] : memref<1x1xf32, #tpu.memory_space<vmem>>, vector<1x1xf32>
    %97 = vector.extract %96[0, 0] : f32 from vector<1x1xf32>
    %98 = vector.broadcast %97 : f32 to vector<1x8xf32>
    %99 = arith.addf %95, %98 : vector<1x8xf32>
    %c0_43 = arith.constant 0 : index
    %c0_44 = arith.constant 0 : index
    %c0_45 = arith.constant 0 : index
    %100 = vector.load %arg11[%c0_43, %c0_44, %c0_45] : memref<1x1x8xf32, #tpu.memory_space<vmem>>, vector<1x1x8xf32>
    %101 = vector.shape_cast %100 : vector<1x1x8xf32> to vector<1x8xf32>
    %102 = vector.shape_cast %99 : vector<1x8xf32> to vector<1x1x8xf32>
    tpu.vector_store %arg11[%c0_43, %c0_44, %c0_45], %102 {strides = array<i32>} : memref<1x1x8xf32, #tpu.memory_space<vmem>>, vector<1x1x8xf32>,
    return
  }
  func.func @transform_0(%arg0: i32) -> (i32, i32, i32) {
    %c0_i32 = arith.constant 0 : i32
    %c0_i32_0 = arith.constant 0 : i32
    %c0_i32_1 = arith.constant 0 : i32
    return %arg0, %c0_i32, %c0_i32_0 : i32, i32, i32
  }
  func.func @transform_1(%arg0: i32) -> (i32, i32, i32) {
    %c0_i32 = arith.constant 0 : i32
    %c0_i32_0 = arith.constant 0 : i32
    %c0_i32_1 = arith.constant 0 : i32
    return %arg0, %c0_i32, %c0_i32_0 : i32, i32, i32
  }
  func.func @transform_2(%arg0: i32) -> (i32, i32) {
    %c0_i32 = arith.constant 0 : i32
    %c0_i32_0 = arith.constant 0 : i32
    %c0_i32_1 = arith.constant 0 : i32
    return %c0_i32, %c0_i32_0 : i32, i32
  }
  func.func @transform_3(%arg0: i32) -> (i32, i32) {
    %c0_i32 = arith.constant 0 : i32
    %c0_i32_0 = arith.constant 0 : i32
    %c0_i32_1 = arith.constant 0 : i32
    return %c0_i32, %c0_i32_0 : i32, i32
  }
  func.func @transform_4(%arg0: i32) -> (i32, i32) {
    %c0_i32 = arith.constant 0 : i32
    %c0_i32_0 = arith.constant 0 : i32
    %c0_i32_1 = arith.constant 0 : i32
    return %c0_i32, %c0_i32_0 : i32, i32
  }
  func.func @transform_5(%arg0: i32) -> (i32, i32) {
    %c0_i32 = arith.constant 0 : i32
    %c0_i32_0 = arith.constant 0 : i32
    %c0_i32_1 = arith.constant 0 : i32
    return %c0_i32, %c0_i32_0 : i32, i32
  }
  func.func @transform_6(%arg0: i32) -> (i32, i32) {
    %c0_i32 = arith.constant 0 : i32
    %c0_i32_0 = arith.constant 0 : i32
    %c0_i32_1 = arith.constant 0 : i32
    return %c0_i32, %c0_i32_0 : i32, i32
  }
  func.func @transform_7(%arg0: i32) -> (i32, i32) {
    %c0_i32 = arith.constant 0 : i32
    %c0_i32_0 = arith.constant 0 : i32
    %c0_i32_1 = arith.constant 0 : i32
    return %c0_i32, %c0_i32_0 : i32, i32
  }
  func.func @transform_8(%arg0: i32) -> (i32, i32) {
    %c0_i32 = arith.constant 0 : i32
    %c0_i32_0 = arith.constant 0 : i32
    %c0_i32_1 = arith.constant 0 : i32
    return %c0_i32, %c0_i32_0 : i32, i32
  }
  func.func @transform_9(%arg0: i32) -> (i32, i32) {
    %c0_i32 = arith.constant 0 : i32
    %c0_i32_0 = arith.constant 0 : i32
    %c0_i32_1 = arith.constant 0 : i32
    return %c0_i32, %c0_i32_0 : i32, i32
  }
  func.func @transform_10(%arg0: i32) -> (i32, i32, i32) {
    %c0_i32 = arith.constant 0 : i32
    %c0_i32_0 = arith.constant 0 : i32
    %c0_i32_1 = arith.constant 0 : i32
    return %arg0, %c0_i32, %c0_i32_0 : i32, i32, i32
  }
}

</mosaic_0001>

<llo_original>
// kernel: tpu_custom_call.1
$region0: #{tpu_custom_call.1}
  #allocation0 [shape = 'u32[]', space=smem, size = 0x4, offset = 0x4, fixed_abs, tag = 'smem constant byte address 0x4 - core index']
  #allocation1 [shape = 'u32[144,128]{1,0:T(1,128)}', space=vmem, size = 0x12000, scoped, tag = 'internal scratch']
  #allocation2 [shape = 'f32[1,1]{1,0:T(1,128)S(1)}', space=vmem, size = 0x200, scoped, tag = 'scoped memory for tpu_custom_call.1']
  %s0 = inlined_call_operand.hbm [shape: f32[2,8,8], index: 0, kind: input, shape index: {}]
  %s1 = inlined_call_operand.vmem [shape: f32[2,8,2], index: 1, kind: input, shape index: {}]
  %s2 = inlined_call_operand.vmem [shape: f32[8,328], index: 2, kind: input, shape index: {}]
  %s3 = inlined_call_operand.hbm [shape: f32[1,328], index: 3, kind: input, shape index: {}]
  %s4 = inlined_call_operand.vmem [shape: f32[2,256], index: 4, kind: input, shape index: {}]
  %s5 = inlined_call_operand.hbm [shape: f32[24,256], index: 5, kind: input, shape index: {}]
  %s6 = inlined_call_operand.hbm [shape: f32[256,256], index: 6, kind: input, shape index: {}]
  %s7 = inlined_call_operand.vmem [shape: f32[1,256], index: 7, kind: input, shape index: {}]
  %s8 = inlined_call_operand.vmem [shape: f32[1,256], index: 8, kind: input, shape index: {}]
  %s9 = inlined_call_operand.<no memory space> [shape: f32[1,1], index: 9, kind: input, shape index: {}]
  %s10 = inlined_call_operand.hbm [shape: f32[2,1,8], index: 10, kind: output, shape index: {}]
  %s11 = sld [smem:[#allocation0]]
  $region89: #{tpu_custom_call.1} parent=0
    _
  %s13 = ssub.s32 1, %s11
  %s14 = scalar_select 0, %s13, %s11
  %v15 = vstv %s9
  %16 = vst [vmem:[#allocation2] sm:$0x1] %v15
  $region1: #{tpu_custom_call.1} parent=0
    #allocation3 [shape = 'u8[8192]{0}', space=vmem, size = 0x2000, scoped, tag = 'input window, operand 0']
    #allocation4 [shape = 's32[2]{0}', space=sflag, size = 0x8, scoped, tag = 'scoped memory for tpu_custom_call.1']
    #allocation5 [shape = 's32[2]{0}', space=sflag, size = 0x8, scoped, tag = 'scoped memory for tpu_custom_call.1']
    #allocation6 [shape = 'u8[1536]{0}', space=vmem, size = 0x800, scoped, tag = 'input window, operand 3, single buffered']
    #allocation7 [shape = 's32[1]{0}', space=sflag, size = 0x4, scoped, tag = 'scoped memory for tpu_custom_call.1']
    #allocation8 [shape = 'u8[24576]{0}', space=vmem, size = 0x6000, scoped, tag = 'input window, operand 5, single buffered']
    #allocation9 [shape = 'u8[262144]{0}', space=vmem, size = 0x40000, scoped, tag = 'input window, operand 6, single buffered']
    #allocation10 [shape = 's32[1]{0}', space=sflag, size = 0x4, scoped, tag = 'scoped memory for tpu_custom_call.1']
    #allocation11 [shape = 'u8[1024]{0}', space=vmem, size = 0x400, scoped, tag = 'output window, operand 0']
    %17 = vsyncpa [#allocation4], 0
    %s18 = scalar_lea.sflag [#allocation4], 1
    %19 = vsyncpa %s18, 0
    %20 = vsyncpa [#allocation7], 0
    %21 = vsyncpa [#allocation10], 0
    %22 = vsyncpa [#allocation5], 0
    %s23 = scalar_lea.sflag [#allocation5], 1
    %24 = vsyncpa %s23, 0
    loop: start=0, step=1, limit=4
    $region2: #{tpu_custom_call.1} parent=1 // loop_pre_header
      _
    $region3: #{tpu_custom_call.1} parent=1 // loop_header
      %s26 = sphi 0, %s30
      %p27 = scmp.ge.s32.totalorder %s26, 4
      %s36 = sphi 0, %s38
      %s39 = sphi 0, %s36
      %s40 = sphi 0, %s39
      %s56 = sphi 0, %s40
      %s62 = sphi 0, %s64
      %s65 = sphi 0, %s62
      %s66 = sphi 0, %s65
      %s82 = sphi 0, %s66
      %s86 = sphi 0, %s86
      %s88 = sphi 0, %s86
      %s89 = sphi 0, %s88
      %s103 = sphi 0, %s89
      %s107 = sphi 0, %s107
      %s109 = sphi 0, %s107
      %s110 = sphi 0, %s109
      %s124 = sphi 0, %s110
      %s128 = sphi 0, %s128
      %s130 = sphi 0, %s128
      %s131 = sphi 0, %s130
      %s145 = sphi 0, %s131
      %s149 = sphi 0, %s149
      %s151 = sphi 0, %s149
      %s152 = sphi 0, %s151
      %s166 = sphi 0, %s152
      %s170 = sphi 0, %s170
      %s172 = sphi 0, %s170
      %s173 = sphi 0, %s172
      %s187 = sphi 0, %s173
      %s191 = sphi 0, %s191
      %s193 = sphi 0, %s191
      %s194 = sphi 0, %s193
      %s208 = sphi 0, %s194
      %s212 = sphi 0, %s212
      %s214 = sphi 0, %s212
      %s215 = sphi 0, %s214
      %s229 = sphi 0, %s215
      %s233 = sphi 0, %s233
      %s235 = sphi 0, %s233
      %s236 = sphi 0, %s235
      %s250 = sphi 0, %s236
      %s256 = sphi 0, %s258
      %s259 = sphi 0, %s256
      %s260 = sphi 0, %s259
      %s276 = sphi 0, %s260
    $region4: #{tpu_custom_call.1} parent=1 // loop_header_branch
      %29 = sbr.rel (%p27) target = $region8
    $region5: #{tpu_custom_call.1} parent=1 // loop_body
      %s31 = ssub.s32 %s26, 1
      %s32 = ssub.s32 %s26, 2
      %s33 = sadd.s32 %s26, 1
      %s34 = ssub.s32 %s26, %s33
      %p35 = scmp.eq.s32.totalorder %s34, 0
      %s37 = sadd.s32 %s36, 1
      %s38 = scalar_select %p35, %s36, %s37
      %p41 = pneg %p35
      %p42 = scmp.eq.s32.totalorder %s26, 1
      %p43 = por %p41, %p42
      %p44 = scmp.ne.s32.totalorder %s36, %s39
      %p45 = scmp.eq.s32.totalorder %s26, 0
      %p46 = por %p44, %p45
      %p47 = scmp.ne.s32.totalorder %s36, %s39
      %p48 = scmp.eq.s32.totalorder %s31, 1
      %p49 = por %p47, %p48
      %p50 = scmp.ne.s32.totalorder %s39, %s40
      %p51 = scmp.eq.s32.totalorder %s31, 0
      %p52 = por %p50, %p51
      %p53 = scmp.ne.s32.totalorder %s39, %s40
      %p54 = scmp.eq.s32.totalorder %s32, 1
      %p55 = por %p53, %p54
      %p57 = scmp.ne.s32.totalorder %s40, %s56
      %p58 = scmp.eq.s32.totalorder %s32, 0
      %p59 = por %p57, %p58
      %s60 = ssub.s32 %s26, %s33
      %p61 = scmp.eq.s32.totalorder %s60, 0
      %s63 = sadd.s32 %s62, 1
      %s64 = scalar_select %p61, %s62, %s63
      %p67 = pneg %p61
      %p68 = scmp.eq.s32.totalorder %s26, 1
      %p69 = por %p67, %p68
      %p70 = scmp.ne.s32.totalorder %s62, %s65
      %p71 = scmp.eq.s32.totalorder %s26, 0
      %p72 = por %p70, %p71
      %p73 = scmp.ne.s32.totalorder %s62, %s65
      %p74 = scmp.eq.s32.totalorder %s31, 1
      %p75 = por %p73, %p74
      %p76 = scmp.ne.s32.totalorder %s65, %s66
      %p77 = scmp.eq.s32.totalorder %s31, 0
      %p78 = por %p76, %p77
      %p79 = scmp.ne.s32.totalorder %s65, %s66
      %p80 = scmp.eq.s32.totalorder %s32, 1
      %p81 = por %p79, %p80
      %p83 = scmp.ne.s32.totalorder %s66, %s82
      %p84 = scmp.eq.s32.totalorder %s32, 0
      %p85 = por %p83, %p84
      %s87 = sadd.s32 %s86, 1
      %p90 = scmp.eq.s32.totalorder %s26, 1
      %p91 = scmp.ne.s32.totalorder %s86, %s88
      %p92 = scmp.eq.s32.totalorder %s26, 0
      %p93 = por %p91, %p92
      %p94 = scmp.ne.s32.totalorder %s86, %s88
      %p95 = scmp.eq.s32.totalorder %s31, 1
      %p96 = por %p94, %p95
      %p97 = scmp.ne.s32.totalorder %s88, %s89
      %p98 = scmp.eq.s32.totalorder %s31, 0
      %p99 = por %p97, %p98
      %p100 = scmp.ne.s32.totalorder %s88, %s89
      %p101 = scmp.eq.s32.totalorder %s32, 1
      %p102 = por %p100, %p101
      %p104 = scmp.ne.s32.totalorder %s89, %s103
      %p105 = scmp.eq.s32.totalorder %s32, 0
      %p106 = por %p104, %p105
      %s108 = sadd.s32 %s107, 1
      %p111 = scmp.eq.s32.totalorder %s26, 1
      %p112 = scmp.ne.s32.totalorder %s107, %s109
      %p113 = scmp.eq.s32.totalorder %s26, 0
      %p114 = por %p112, %p113
      %p115 = scmp.ne.s32.totalorder %s107, %s109
      %p116 = scmp.eq.s32.totalorder %s31, 1
      %p117 = por %p115, %p116
      %p118 = scmp.ne.s32.totalorder %s109, %s110
      %p119 = scmp.eq.s32.totalorder %s31, 0
      %p120 = por %p118, %p119
      %p121 = scmp.ne.s32.totalorder %s109, %s110
      %p122 = scmp.eq.s32.totalorder %s32, 1
      %p123 = por %p121, %p122
      %p125 = scmp.ne.s32.totalorder %s110, %s124
      %p126 = scmp.eq.s32.totalorder %s32, 0
      %p127 = por %p125, %p126
      %s129 = sadd.s32 %s128, 1
      %p132 = scmp.eq.s32.totalorder %s26, 1
      %p133 = scmp.ne.s32.totalorder %s128, %s130
      %p134 = scmp.eq.s32.totalorder %s26, 0
      %p135 = por %p133, %p134
      %p136 = scmp.ne.s32.totalorder %s128, %s130
      %p137 = scmp.eq.s32.totalorder %s31, 1
      %p138 = por %p136, %p137
      %p139 = scmp.ne.s32.totalorder %s130, %s131
      %p140 = scmp.eq.s32.totalorder %s31, 0
      %p141 = por %p139, %p140
      %p142 = scmp.ne.s32.totalorder %s130, %s131
      %p143 = scmp.eq.s32.totalorder %s32, 1
      %p144 = por %p142, %p143
      %p146 = scmp.ne.s32.totalorder %s131, %s145
      %p147 = scmp.eq.s32.totalorder %s32, 0
      %p148 = por %p146, %p147
      %s150 = sadd.s32 %s149, 1
      %p153 = scmp.eq.s32.totalorder %s26, 1
      %p154 = scmp.ne.s32.totalorder %s149, %s151
      %p155 = scmp.eq.s32.totalorder %s26, 0
      %p156 = por %p154, %p155
      %p157 = scmp.ne.s32.totalorder %s149, %s151
      %p158 = scmp.eq.s32.totalorder %s31, 1
      %p159 = por %p157, %p158
      %p160 = scmp.ne.s32.totalorder %s151, %s152
      %p161 = scmp.eq.s32.totalorder %s31, 0
      %p162 = por %p160, %p161
      %p163 = scmp.ne.s32.totalorder %s151, %s152
      %p164 = scmp.eq.s32.totalorder %s32, 1
      %p165 = por %p163, %p164
      %p167 = scmp.ne.s32.totalorder %s152, %s166
      %p168 = scmp.eq.s32.totalorder %s32, 0
      %p169 = por %p167, %p168
      %s171 = sadd.s32 %s170, 1
      %p174 = scmp.eq.s32.totalorder %s26, 1
      %p175 = scmp.ne.s32.totalorder %s170, %s172
      %p176 = scmp.eq.s32.totalorder %s26, 0
      %p177 = por %p175, %p176
      %p178 = scmp.ne.s32.totalorder %s170, %s172
      %p179 = scmp.eq.s32.totalorder %s31, 1
      %p180 = por %p178, %p179
      %p181 = scmp.ne.s32.totalorder %s172, %s173
      %p182 = scmp.eq.s32.totalorder %s31, 0
      %p183 = por %p181, %p182
      %p184 = scmp.ne.s32.totalorder %s172, %s173
      %p185 = scmp.eq.s32.totalorder %s32, 1
      %p186 = por %p184, %p185
      %p188 = scmp.ne.s32.totalorder %s173, %s187
      %p189 = scmp.eq.s32.totalorder %s32, 0
      %p190 = por %p188, %p189
      %s192 = sadd.s32 %s191, 1
      %p195 = scmp.eq.s32.totalorder %s26, 1
      %p196 = scmp.ne.s32.totalorder %s191, %s193
      %p197 = scmp.eq.s32.totalorder %s26, 0
      %p198 = por %p196, %p197
      %p199 = scmp.ne.s32.totalorder %s191, %s193
      %p200 = scmp.eq.s32.totalorder %s31, 1
      %p201 = por %p199, %p200
      %p202 = scmp.ne.s32.totalorder %s193, %s194
      %p203 = scmp.eq.s32.totalorder %s31, 0
      %p204 = por %p202, %p203
      %p205 = scmp.ne.s32.totalorder %s193, %s194
      %p206 = scmp.eq.s32.totalorder %s32, 1
      %p207 = por %p205, %p206
      %p209 = scmp.ne.s32.totalorder %s194, %s208
      %p210 = scmp.eq.s32.totalorder %s32, 0
      %p211 = por %p209, %p210
      %s213 = sadd.s32 %s212, 1
      %p216 = scmp.eq.s32.totalorder %s26, 1
      %p217 = scmp.ne.s32.totalorder %s212, %s214
      %p218 = scmp.eq.s32.totalorder %s26, 0
      %p219 = por %p217, %p218
      %p220 = scmp.ne.s32.totalorder %s212, %s214
      %p221 = scmp.eq.s32.totalorder %s31, 1
      %p222 = por %p220, %p221
      %p223 = scmp.ne.s32.totalorder %s214, %s215
      %p224 = scmp.eq.s32.totalorder %s31, 0
      %p225 = por %p223, %p224
      %p226 = scmp.ne.s32.totalorder %s214, %s215
      %p227 = scmp.eq.s32.totalorder %s32, 1
      %p228 = por %p226, %p227
      %p230 = scmp.ne.s32.totalorder %s215, %s229
      %p231 = scmp.eq.s32.totalorder %s32, 0
      %p232 = por %p230, %p231
      %s234 = sadd.s32 %s233, 1
      %p237 = scmp.eq.s32.totalorder %s26, 1
      %p238 = scmp.ne.s32.totalorder %s233, %s235
      %p239 = scmp.eq.s32.totalorder %s26, 0
      %p240 = por %p238, %p239
      %p241 = scmp.ne.s32.totalorder %s233, %s235
      %p242 = scmp.eq.s32.totalorder %s31, 1
      %p243 = por %p241, %p242
      %p244 = scmp.ne.s32.totalorder %s235, %s236
      %p245 = scmp.eq.s32.totalorder %s31, 0
      %p246 = por %p244, %p245
      %p247 = scmp.ne.s32.totalorder %s235, %s236
      %p248 = scmp.eq.s32.totalorder %s32, 1
      %p249 = por %p247, %p248
      %p251 = scmp.ne.s32.totalorder %s236, %s250
      %p252 = scmp.eq.s32.totalorder %s32, 0
      %p253 = por %p251, %p252
      %s254 = ssub.s32 %s26, %s33
      %p255 = scmp.eq.s32.totalorder %s254, 0
      %s257 = sadd.s32 %s256, 1
      %s258 = scalar_select %p255, %s256, %s257
      %p261 = pneg %p255
      %p262 = scmp.eq.s32.totalorder %s26, 1
      %p263 = por %p261, %p262
      %p264 = scmp.ne.s32.totalorder %s256, %s259
      %p265 = scmp.eq.s32.totalorder %s26, 0
      %p266 = por %p264, %p265
      %p267 = scmp.ne.s32.totalorder %s256, %s259
      %p268 = scmp.eq.s32.totalorder %s31, 1
      %p269 = por %p267, %p268
      %p270 = scmp.ne.s32.totalorder %s259, %s260
      %p271 = scmp.eq.s32.totalorder %s31, 0
      %p272 = por %p270, %p271
      %p273 = scmp.ne.s32.totalorder %s259, %s260
      %p274 = scmp.eq.s32.totalorder %s32, 1
      %p275 = por %p273, %p274
      %p277 = scmp.ne.s32.totalorder %s260, %s276
      %p278 = scmp.eq.s32.totalorder %s32, 0
      %p279 = por %p277, %p278
      %p280 = scmp.le.s32.totalorder 1, %s26
      %p281 = scmp.lt.s32.totalorder %s26, 3
      %p282 = pnand %p280, %p281
      %p283 = pneg %p282
      // Predicated region
      $region9: #{tpu_custom_call.1} parent=5 // pred_check
        _
      $region10: #{tpu_custom_call.1} parent=5 // pred_check_branch
        %285 = sbr.rel (%p282) target = $region12
      $region11: #{tpu_custom_call.1} parent=5 // pred_region
        %s286 = ssub.s32 %s26, 1
        // Predicated region
        $region13: #{tpu_custom_call.1} parent=11 // pred_check
          %p287 = pneg %p99
        $region14: #{tpu_custom_call.1} parent=11 // pred_check_branch
          %289 = sbr.rel (%p287) target = $region16
        $region15: #{tpu_custom_call.1} parent=11 // pred_region
          _
        $region16: #{tpu_custom_call.1} parent=11 // pred_fallthru
          _
        // Predicated region
        $region17: #{tpu_custom_call.1} parent=11 // pred_check
          %p290 = pneg %p120
        $region18: #{tpu_custom_call.1} parent=11 // pred_check_branch
          %292 = sbr.rel (%p290) target = $region20
        $region19: #{tpu_custom_call.1} parent=11 // pred_region
          %s294 = ssub.s32 48, 48
          %295 = vsyncadd [#allocation7], %s294
          %s297 = sshll.u32 [#allocation6], 4
          %s298 = int_to_ptr.vmem [resolvable:$true] %s297
          %300 = dma.hbm_to_vmem [thread:$0]  %s3, 48, %s298, [#allocation7]
        $region20: #{tpu_custom_call.1} parent=11 // pred_fallthru
          _
        // Predicated region
        $region21: #{tpu_custom_call.1} parent=11 // pred_check
          %p301 = pneg %p141
        $region22: #{tpu_custom_call.1} parent=11 // pred_check_branch
          %303 = sbr.rel (%p301) target = $region24
        $region23: #{tpu_custom_call.1} parent=11 // pred_region
          _
        $region24: #{tpu_custom_call.1} parent=11 // pred_fallthru
          _
        // Predicated region
        $region25: #{tpu_custom_call.1} parent=11 // pred_check
          %p304 = pneg %p162
        $region26: #{tpu_custom_call.1} parent=11 // pred_check_branch
          %306 = sbr.rel (%p304) target = $region28
        $region27: #{tpu_custom_call.1} parent=11 // pred_region
          %s308 = ssub.s32 768, 768
          %309 = vsyncadd [#allocation7], %s308
          %s310 = sshll.u32 [#allocation8], 4
          %s311 = int_to_ptr.vmem [resolvable:$true] %s310
          %316 = dma.hbm_to_vmem [thread:$0]  %s5, 768, %s311, [#allocation7], 256, 256, 16
        $region28: #{tpu_custom_call.1} parent=11 // pred_fallthru
          _
        // Predicated region
        $region29: #{tpu_custom_call.1} parent=11 // pred_check
          %p317 = pneg %p183
        $region30: #{tpu_custom_call.1} parent=11 // pred_check_branch
          %319 = sbr.rel (%p317) target = $region32
        $region31: #{tpu_custom_call.1} parent=11 // pred_region
          %s321 = ssub.s32 8192, 8192
          %322 = vsyncadd [#allocation10], %s321
          %s323 = sshll.u32 [#allocation9], 4
          %s324 = int_to_ptr.vmem [resolvable:$true] %s323
          %329 = dma.hbm_to_vmem [thread:$0]  %s6, 8192, %s324, [#allocation10], 256, 256, 16
        $region32: #{tpu_custom_call.1} parent=11 // pred_fallthru
          _
        // Predicated region
        $region33: #{tpu_custom_call.1} parent=11 // pred_check
          %p330 = pneg %p204
        $region34: #{tpu_custom_call.1} parent=11 // pred_check_branch
          %332 = sbr.rel (%p330) target = $region36
        $region35: #{tpu_custom_call.1} parent=11 // pred_region
          _
        $region36: #{tpu_custom_call.1} parent=11 // pred_fallthru
          _
        // Predicated region
        $region37: #{tpu_custom_call.1} parent=11 // pred_check
          %p333 = pneg %p225
        $region38: #{tpu_custom_call.1} parent=11 // pred_check_branch
          %335 = sbr.rel (%p333) target = $region40
        $region39: #{tpu_custom_call.1} parent=11 // pred_region
          _
        $region40: #{tpu_custom_call.1} parent=11 // pred_fallthru
          _
        // Predicated region
        $region41: #{tpu_custom_call.1} parent=11 // pred_check
          %p336 = pneg %p246
        $region42: #{tpu_custom_call.1} parent=11 // pred_check_branch
          %338 = sbr.rel (%p336) target = $region44
        $region43: #{tpu_custom_call.1} parent=11 // pred_region
          _
        $region44: #{tpu_custom_call.1} parent=11 // pred_fallthru
          _
      $region12: #{tpu_custom_call.1} parent=5 // pred_fallthru
        _
      %p339 = scmp.lt.s32.totalorder %s26, 2
      // Predicated region
      $region45: #{tpu_custom_call.1} parent=5 // pred_check
        %p340 = pneg %p339
      $region46: #{tpu_custom_call.1} parent=5 // pred_check_branch
        %342 = sbr.rel (%p340) target = $region48
      $region47: #{tpu_custom_call.1} parent=5 // pred_region
        // Predicated region
        $region49: #{tpu_custom_call.1} parent=47 // pred_check
          %p343 = pneg %p46
        $region50: #{tpu_custom_call.1} parent=47 // pred_check_branch
          %345 = sbr.rel (%p343) target = $region52
        $region51: #{tpu_custom_call.1} parent=47 // pred_region
          %s346 = sand.u32 %s36, 1
          %s347 = scalar_lea.sflag [#allocation4], %s346
          %s348 = sand.u32 %s36, 1
          %s349 = smul.addr %s348, 8
          %s350 = scalar_lea.vmem [#allocation3], %s349
          %s352 = ssub.s32 128, 128
          %353 = vsyncadd %s347, %s352
          %s354 = smul.addr %s26, 128
          %s355 = scalar_lea.hbm %s0, %s354
          %s357 = sshll.u32 %s350, 4
          %s358 = int_to_ptr.vmem [resolvable:$true] %s357
          %360 = dma.hbm_to_vmem [thread:$0]  %s355, 128, %s358, %s347
        $region52: #{tpu_custom_call.1} parent=47 // pred_fallthru
          _
        // Predicated region
        $region53: #{tpu_custom_call.1} parent=47 // pred_check
          %p361 = pneg %p72
        $region54: #{tpu_custom_call.1} parent=47 // pred_check_branch
          %363 = sbr.rel (%p361) target = $region56
        $region55: #{tpu_custom_call.1} parent=47 // pred_region
          %p364 = scmp.lt.s32.totalorder %s26, 1
          %s365 = scalar_select %p364, %s26, 1
          %s366 = smul.addr %s365, 8
          %s367 = scalar_lea.vmem %s1, %s366
        $region56: #{tpu_custom_call.1} parent=47 // pred_fallthru
          _
      $region48: #{tpu_custom_call.1} parent=5 // pred_fallthru
        _
      %p368 = scmp.le.s32.totalorder 1, %s26
      %p369 = scmp.lt.s32.totalorder %s26, 3
      %p370 = pnand %p368, %p369
      %p371 = pneg %p370
      // Predicated region
      $region57: #{tpu_custom_call.1} parent=5 // pred_check
        _
      $region58: #{tpu_custom_call.1} parent=5 // pred_check_branch
        %373 = sbr.rel (%p370) target = $region60
      $region59: #{tpu_custom_call.1} parent=5 // pred_region
        %s374 = ssub.s32 %s26, 1
        %s375 = sand.u32 %s39, 1
        %s376 = scalar_lea.sflag [#allocation4], %s375
        %s377 = sand.u32 %s39, 1
        %s378 = smul.addr %s377, 8
        %s379 = scalar_lea.vmem [#allocation3], %s378
        // Predicated region
        $region61: #{tpu_custom_call.1} parent=59 // pred_check
          %p380 = pneg %p52
        $region62: #{tpu_custom_call.1} parent=59 // pred_check_branch
          %382 = sbr.rel (%p380) target = $region64
        $region63: #{tpu_custom_call.1} parent=59 // pred_region
          %383 = dma.done %s376, 128
        $region64: #{tpu_custom_call.1} parent=59 // pred_fallthru
          _
        // Predicated region
        $region65: #{tpu_custom_call.1} parent=59 // pred_check
          %p384 = pneg %p120
        $region66: #{tpu_custom_call.1} parent=59 // pred_check_branch
          %386 = sbr.rel (%p384) target = $region68
        $region67: #{tpu_custom_call.1} parent=59 // pred_region
          %387 = dma.done [#allocation7], 48
        $region68: #{tpu_custom_call.1} parent=59 // pred_fallthru
          _
        // Predicated region
        $region69: #{tpu_custom_call.1} parent=59 // pred_check
          %p388 = pneg %p162
        $region70: #{tpu_custom_call.1} parent=59 // pred_check_branch
          %390 = sbr.rel (%p388) target = $region72
        $region71: #{tpu_custom_call.1} parent=59 // pred_region
          %391 = dma.done [#allocation7], 768
        $region72: #{tpu_custom_call.1} parent=59 // pred_fallthru
          _
        // Predicated region
        $region73: #{tpu_custom_call.1} parent=59 // pred_check
          %p392 = pneg %p183
        $region74: #{tpu_custom_call.1} parent=59 // pred_check_branch
          %394 = sbr.rel (%p392) target = $region76
        $region75: #{tpu_custom_call.1} parent=59 // pred_region
          %395 = dma.done [#allocation10], 8192
        $region76: #{tpu_custom_call.1} parent=59 // pred_fallthru
          _
        %s396 = sand.u32 %s39, 1
        %s397 = scalar_lea.sflag [#allocation4], %s396
        %s398 = sand.u32 %s39, 1
        %s399 = smul.addr %s398, 8
        %s400 = scalar_lea.vmem [#allocation3], %s399
        %p401 = pneg %p52
        %p402 = pneg %p49
        %p403 = scmp.lt.s32.totalorder %s31, 1
        %s404 = scalar_select %p403, %s31, 1
        %s405 = smul.addr %s404, 8
        %s406 = scalar_lea.vmem %s1, %s405
        %p407 = pneg %p78
        %p408 = pneg %p75
        %p409 = pneg %p99
        %p410 = pneg %p96
        %p411 = pneg %p120
        %p412 = pneg %p117
        %p413 = pneg %p141
        %p414 = pneg %p138
        %p415 = pneg %p162
        %p416 = pneg %p159
        %p417 = pneg %p183
        %p418 = pneg %p180
        %p419 = pneg %p204
        %p420 = pneg %p201
        %p421 = pneg %p225
        %p422 = pneg %p222
        %p423 = pneg %p246
        %p424 = pneg %p243
        %p425 = pneg %p272
        %p426 = pneg %p269
        %s427 = sand.u32 %s259, 1
        %s428 = scalar_lea.sflag [#allocation5], %s427
        %s429 = sand.u32 %s259, 1
        %s430 = scalar_lea.vmem [#allocation11], %s429
        %p431 = scmp.lt.s32.totalorder %s31, 1
        %s432 = scalar_select %p431, %s31, 1
        %s433 = smul.addr %s432, 8
        %s434 = scalar_lea.vmem %s1, %s433
        %v435 = vld [vmem:[%s379] sm:$0xff]
        %v436 = vld [vmem:[%s434] sm:$0xff]
        %v437 = vld [vmem:[%s2] sm:$0xff]
        %v438 = vld [vmem:[%s2 + $0x8] sm:$0xff]
        %v439 = vld [vmem:[%s2 + $0x10] sm:$0xff]
        %v440 = vld [vmem:[#allocation6] sm:$0x7]
        %v442 = vlaneseq
        %v443 = vshrl.u32 %v442, 7
        %v444 = vsub.s32 0, %v443
        %v445 = vrot.slane %v440, %v444
        %v446 = vlaneseq
        %v447 = vshrl.u32 %v446, 7
        %v448 = vsub.s32 1, %v447
        %v449 = vrot.slane %v440, %v448
        %v450 = vlaneseq
        %v451 = vshrl.u32 %v450, 7
        %v452 = vsub.s32 2, %v451
        %v453 = vrot.slane %v440, %v452
        %vm457 = vcmask 64512
        %v459 = vsel %vm457, %v435, 0
        %461 = vmatprep.subr.mxu0 0.0
        %462 = vmatpush1.msra.mxu0 0.0
        %463 = vmatprep.subr.mxu0 0.0
        %464 = vmatpush1.msra.mxu0 0.0
        %465 = vmatprep.subr.mxu0 0.0
        %466 = vmatpush1.msra.mxu0 0.0
        %467 = vmatprep.subr.mxu0 0.0
        %468 = vmatpush1.msra.mxu0 0.0
        %469 = vmatprep.subr.mxu0 0.0
        %470 = vmatpush1.msra.mxu0 0.0
        %471 = vmatprep.subr.mxu0 0.0
        %472 = vmatpush1.msra.mxu0 0.0
        %473 = vmatprep.subr.mxu0 0.0
        %474 = vmatpush1.msra.mxu0 0.0
        %475 = vmatprep.subr.mxu0 0.0
        %476 = vmatpush1.msra.mxu0 0.0
        %477 = vmatprep.subr.mxu0 0.0
        %478 = vmatpush1.msra.mxu0 0.0
        %479 = vmatprep.subr.mxu0 0.0
        %480 = vmatpush1.msra.mxu0 0.0
        %481 = vmatprep.subr.mxu0 0.0
        %482 = vmatpush1.msra.mxu0 0.0
        %483 = vmatprep.subr.mxu0 0.0
        %484 = vmatpush1.msra.mxu0 0.0
        %485 = vmatprep.subr.mxu0 0.0
        %486 = vmatpush1.msra.mxu0 0.0
        %487 = vmatprep.subr.mxu0 0.0
        %488 = vmatpush1.msra.mxu0 0.0
        %489 = vmatprep.subr.mxu0 0.0
        %490 = vmatpush1.msra.mxu0 0.0
        %491 = vmatprep.subr.mxu0 %v438
        %492 = vmatpush1.msra.mxu0 %v437
        %493 = vmatprep.subr.mxu0 0.0
        %494 = vmatpush2.msra.mxu0 0.0
        %495 = vmatprep.subr.mxu0 0.0
        %496 = vmatpush2.msra.mxu0 0.0
        %497 = vmatprep.subr.mxu0 0.0
        %498 = vmatpush2.msra.mxu0 0.0
        %499 = vmatprep.subr.mxu0 0.0
        %500 = vmatpush2.msra.mxu0 0.0
        %501 = vmatprep.subr.mxu0 0.0
        %502 = vmatpush2.msra.mxu0 0.0
        %503 = vmatprep.subr.mxu0 0.0
        %504 = vmatpush2.msra.mxu0 0.0
        %505 = vmatprep.subr.mxu0 0.0
        %506 = vmatpush2.msra.mxu0 0.0
        %507 = vmatprep.subr.mxu0 0.0
        %508 = vmatpush2.msra.mxu0 0.0
        %509 = vmatprep.subr.mxu0 0.0
        %510 = vmatpush2.msra.mxu0 0.0
        %511 = vmatprep.subr.mxu0 0.0
        %512 = vmatpush2.msra.mxu0 0.0
        %513 = vmatprep.subr.mxu0 0.0
        %514 = vmatpush2.msra.mxu0 0.0
        %515 = vmatprep.subr.mxu0 0.0
        %516 = vmatpush2.msra.mxu0 0.0
        %517 = vmatprep.subr.mxu0 0.0
        %518 = vmatpush2.msra.mxu0 0.0
        %519 = vmatprep.subr.mxu0 0.0
        %520 = vmatpush2.msra.mxu0 0.0
        %521 = vmatprep.subr.mxu0 0.0
        %522 = vmatpush2.msra.mxu0 0.0
        %523 = vmatprep.subr.mxu0 0.0
        %524 = vmatpush2.msra.mxu0 0.0
        %525 = vmatprep.mubr.f32.mxu0 0.0
        %526 = vmatmul.mubr.f32.gmra.mxu0 %v459
        %v527 = vpop.f32.mrf.mxu0
        %v528 = vadd.f32 %v445, %v527
        %v529 = vpop.f32.mrf.mxu0
        %v530 = vadd.f32 %v449, %v529
        %531 = vdwg.mxu0
        %532 = vmatprep.subr.mxu0 0.0
        %533 = vmatpush1.msra.mxu0 0.0
        %534 = vmatprep.subr.mxu0 0.0
        %535 = vmatpush1.msra.mxu0 0.0
        %536 = vmatprep.subr.mxu0 0.0
        %537 = vmatpush1.msra.mxu0 0.0
        %538 = vmatprep.subr.mxu0 0.0
        %539 = vmatpush1.msra.mxu0 0.0
        %540 = vmatprep.subr.mxu0 0.0
        %541 = vmatpush1.msra.mxu0 0.0
        %542 = vmatprep.subr.mxu0 0.0
        %543 = vmatpush1.msra.mxu0 0.0
        %544 = vmatprep.subr.mxu0 0.0
        %545 = vmatpush1.msra.mxu0 0.0
        %546 = vmatprep.subr.mxu0 0.0
        %547 = vmatpush1.msra.mxu0 0.0
        %548 = vmatprep.subr.mxu0 0.0
        %549 = vmatpush1.msra.mxu0 0.0
        %550 = vmatprep.subr.mxu0 0.0
        %551 = vmatpush1.msra.mxu0 0.0
        %552 = vmatprep.subr.mxu0 0.0
        %553 = vmatpush1.msra.mxu0 0.0
        %554 = vmatprep.subr.mxu0 0.0
        %555 = vmatpush1.msra.mxu0 0.0
        %556 = vmatprep.subr.mxu0 0.0
        %557 = vmatpush1.msra.mxu0 0.0
        %558 = vmatprep.subr.mxu0 0.0
        %559 = vmatpush1.msra.mxu0 0.0
        %560 = vmatprep.subr.mxu0 0.0
        %561 = vmatpush1.msra.mxu0 0.0
        %562 = vmatprep.subr.mxu0 0.0
        %563 = vmatpush1.msra.mxu0 %v439
        %564 = vmatprep.subr.mxu0 0.0
        %565 = vmatpush2.msra.mxu0 0.0
        %566 = vmatprep.subr.mxu0 0.0
        %567 = vmatpush2.msra.mxu0 0.0
        %568 = vmatprep.subr.mxu0 0.0
        %569 = vmatpush2.msra.mxu0 0.0
        %570 = vmatprep.subr.mxu0 0.0
        %571 = vmatpush2.msra.mxu0 0.0
        %572 = vmatprep.subr.mxu0 0.0
        %573 = vmatpush2.msra.mxu0 0.0
        %574 = vmatprep.subr.mxu0 0.0
        %575 = vmatpush2.msra.mxu0 0.0
        %576 = vmatprep.subr.mxu0 0.0
        %577 = vmatpush2.msra.mxu0 0.0
        %578 = vmatprep.subr.mxu0 0.0
        %579 = vmatpush2.msra.mxu0 0.0
        %580 = vmatprep.subr.mxu0 0.0
        %581 = vmatpush2.msra.mxu0 0.0
        %582 = vmatprep.subr.mxu0 0.0
        %583 = vmatpush2.msra.mxu0 0.0
        %584 = vmatprep.subr.mxu0 0.0
        %585 = vmatpush2.msra.mxu0 0.0
        %586 = vmatprep.subr.mxu0 0.0
        %587 = vmatpush2.msra.mxu0 0.0
        %588 = vmatprep.subr.mxu0 0.0
        %589 = vmatpush2.msra.mxu0 0.0
        %590 = vmatprep.subr.mxu0 0.0
        %591 = vmatpush2.msra.mxu0 0.0
        %592 = vmatprep.subr.mxu0 0.0
        %593 = vmatpush2.msra.mxu0 0.0
        %594 = vmatprep.subr.mxu0 0.0
        %595 = vmatpush2.msra.mxu0 0.0
        %596 = vmatprep.mubr.f32.mxu0 0.0
        %597 = vmatmul.mubr.f32.gmra.mxu0 %v459
        %v598 = vpop.f32.mrf.mxu0
        %v599 = vadd.f32 %v453, %v598
        %v600 = vpop.f32.mrf.mxu0
        %601 = vdwg.mxu0
        %v602 = vld [vmem:[%s4] sm:$0xf]
        %v605 = vunpack.c.l.s4 1983009808
        %v606 = vunpack.c.0.s8 %v605
        %v607 = vlaneseq
        %v608 = vshrl.u32 %v607, 7
        %v609 = vsub.s32 %v606, %v608
        %v610 = vrot.slane %v602, %v609
        %v611 = vcombine.high %v610, %v610
        %vm612 = vcmask 15360
        %v614 = vsel %vm612, %v436, 0
        %vm616 = vcmask 1041408
        %v617 = vsel %vm616, %v610, 0
        %v619 = vsel %vm616, %v611, 0
        %621 = vmatprep.subr.mxu0 0.0
        %622 = vmatpush1.msra.mxu0 0.0
        %623 = vmatprep.subr.mxu0 0.0
        %624 = vmatpush1.msra.mxu0 0.0
        %625 = vmatprep.subr.mxu0 0.0
        %626 = vmatpush1.msra.mxu0 0.0
        %627 = vmatprep.subr.mxu0 0.0
        %628 = vmatpush1.msra.mxu0 0.0
        %629 = vmatprep.subr.mxu0 0.0
        %630 = vmatpush1.msra.mxu0 0.0
        %631 = vmatprep.subr.mxu0 0.0
        %632 = vmatpush1.msra.mxu0 0.0
        %633 = vmatprep.subr.mxu0 0.0
        %634 = vmatpush1.msra.mxu0 0.0
        %635 = vmatprep.subr.mxu0 0.0
        %636 = vmatpush1.msra.mxu0 0.0
        %637 = vmatprep.subr.mxu0 0.0
        %638 = vmatpush1.msra.mxu0 0.0
        %639 = vmatprep.subr.mxu0 0.0
        %640 = vmatpush1.msra.mxu0 0.0
        %641 = vmatprep.subr.mxu0 0.0
        %642 = vmatpush1.msra.mxu0 0.0
        %643 = vmatprep.subr.mxu0 0.0
        %644 = vmatpush1.msra.mxu0 0.0
        %645 = vmatprep.subr.mxu0 0.0
        %646 = vmatpush1.msra.mxu0 0.0
        %647 = vmatprep.subr.mxu0 0.0
        %648 = vmatpush1.msra.mxu0 0.0
        %649 = vmatprep.subr.mxu0 0.0
        %650 = vmatpush1.msra.mxu0 0.0
        %651 = vmatprep.subr.mxu0 %v619
        %652 = vmatpush1.msra.mxu0 %v617
        %653 = vmatprep.subr.mxu0 0.0
        %654 = vmatpush2.msra.mxu0 0.0
        %655 = vmatprep.subr.mxu0 0.0
        %656 = vmatpush2.msra.mxu0 0.0
        %657 = vmatprep.subr.mxu0 0.0
        %658 = vmatpush2.msra.mxu0 0.0
        %659 = vmatprep.subr.mxu0 0.0
        %660 = vmatpush2.msra.mxu0 0.0
        %661 = vmatprep.subr.mxu0 0.0
        %662 = vmatpush2.msra.mxu0 0.0
        %663 = vmatprep.subr.mxu0 0.0
        %664 = vmatpush2.msra.mxu0 0.0
        %665 = vmatprep.subr.mxu0 0.0
        %666 = vmatpush2.msra.mxu0 0.0
        %667 = vmatprep.subr.mxu0 0.0
        %668 = vmatpush2.msra.mxu0 0.0
        %669 = vmatprep.subr.mxu0 0.0
        %670 = vmatpush2.msra.mxu0 0.0
        %671 = vmatprep.subr.mxu0 0.0
        %672 = vmatpush2.msra.mxu0 0.0
        %673 = vmatprep.subr.mxu0 0.0
        %674 = vmatpush2.msra.mxu0 0.0
        %675 = vmatprep.subr.mxu0 0.0
        %676 = vmatpush2.msra.mxu0 0.0
        %677 = vmatprep.subr.mxu0 0.0
        %678 = vmatpush2.msra.mxu0 0.0
        %679 = vmatprep.subr.mxu0 0.0
        %680 = vmatpush2.msra.mxu0 0.0
        %681 = vmatprep.subr.mxu0 0.0
        %682 = vmatpush2.msra.mxu0 0.0
        %683 = vmatprep.subr.mxu0 0.0
        %684 = vmatpush2.msra.mxu0 0.0
        %685 = vmatprep.mubr.f32.mxu0 0.0
        %686 = vmatmul.mubr.f32.gmra.mxu0 %v614
        %v687 = vpop.f32.mrf.mxu0
        %v688 = vadd.f32 0.0, %v687
        %v689 = vpop.f32.mrf.mxu0
        %v690 = vadd.f32 0.0, %v689
        %691 = vdwg.mxu0
        %v692 = vadd.f32 %v528, %v688
        %v693 = vadd.f32 %v530, %v690
        %v694 = vld [vmem:[#allocation8] sm:$0xff]
        %v695 = vld [vmem:[#allocation8 + $0x8] sm:$0xff]
        %v696 = vld [vmem:[#allocation8 + $0x10] sm:$0xff]
        %v697 = vld [vmem:[#allocation8 + $0x18] sm:$0xff]
        %v698 = vld [vmem:[#allocation8 + $0x20] sm:$0xff]
        %v699 = vld [vmem:[#allocation8 + $0x28] sm:$0xff]
        %701 = vrot.lane.b32.xlu0 %v599, 104
        %v702 = vpop.permute.xlu0 %701
        %v703 = vsel %vm457, %v599, 0
        %v705 = vsel %vm457, %v702, 0
        %707 = vmatprep.subr.mxu0 0.0
        %708 = vmatpush1.xpose.msra.mxu0 0.0
        %709 = vmatprep.subr.mxu0 0.0
        %710 = vmatpush1.xpose.msra.mxu0 0.0
        %711 = vmatprep.subr.mxu0 0.0
        %712 = vmatpush1.xpose.msra.mxu0 0.0
        %713 = vmatprep.subr.mxu0 0.0
        %714 = vmatpush1.xpose.msra.mxu0 0.0
        %715 = vmatprep.subr.mxu0 0.0
        %716 = vmatpush1.xpose.msra.mxu0 0.0
        %717 = vmatprep.subr.mxu0 0.0
        %718 = vmatpush1.xpose.msra.mxu0 0.0
        %719 = vmatprep.subr.mxu0 0.0
        %720 = vmatpush1.xpose.msra.mxu0 0.0
        %721 = vmatprep.subr.mxu0 0.0
        %722 = vmatpush1.xpose.msra.mxu0 0.0
        %723 = vmatprep.subr.mxu0 0.0
        %724 = vmatpush1.xpose.msra.mxu0 0.0
        %725 = vmatprep.subr.mxu0 0.0
        %726 = vmatpush1.xpose.msra.mxu0 0.0
        %727 = vmatprep.subr.mxu0 0.0
        %728 = vmatpush1.xpose.msra.mxu0 0.0
        %729 = vmatprep.subr.mxu0 0.0
        %730 = vmatpush1.xpose.msra.mxu0 0.0
        %731 = vmatprep.subr.mxu0 0.0
        %732 = vmatpush1.xpose.msra.mxu0 0.0
        %733 = vmatprep.subr.mxu0 0.0
        %734 = vmatpush1.xpose.msra.mxu0 0.0
        %735 = vmatprep.subr.mxu0 0.0
        %736 = vmatpush1.xpose.msra.mxu0 0.0
        %737 = vmatprep.subr.mxu0 0.0
        %738 = vmatpush1.xpose.msra.mxu0 %v705
        %739 = vmatprep.subr.mxu0 0.0
        %740 = vmatpush2.xpose.msra.mxu0 0.0
        %741 = vmatprep.subr.mxu0 0.0
        %742 = vmatpush2.xpose.msra.mxu0 0.0
        %743 = vmatprep.subr.mxu0 0.0
        %744 = vmatpush2.xpose.msra.mxu0 0.0
        %745 = vmatprep.subr.mxu0 0.0
        %746 = vmatpush2.xpose.msra.mxu0 0.0
        %747 = vmatprep.subr.mxu0 0.0
        %748 = vmatpush2.xpose.msra.mxu0 0.0
        %749 = vmatprep.subr.mxu0 0.0
        %750 = vmatpush2.xpose.msra.mxu0 0.0
        %751 = vmatprep.subr.mxu0 0.0
        %752 = vmatpush2.xpose.msra.mxu0 0.0
        %753 = vmatprep.subr.mxu0 0.0
        %754 = vmatpush2.xpose.msra.mxu0 0.0
        %755 = vmatprep.subr.mxu0 0.0
        %756 = vmatpush2.xpose.msra.mxu0 0.0
        %757 = vmatprep.subr.mxu0 0.0
        %758 = vmatpush2.xpose.msra.mxu0 0.0
        %759 = vmatprep.subr.mxu0 0.0
        %760 = vmatpush2.xpose.msra.mxu0 0.0
        %761 = vmatprep.subr.mxu0 0.0
        %762 = vmatpush2.xpose.msra.mxu0 0.0
        %763 = vmatprep.subr.mxu0 0.0
        %764 = vmatpush2.xpose.msra.mxu0 0.0
        %765 = vmatprep.subr.mxu0 0.0
        %766 = vmatpush2.xpose.msra.mxu0 0.0
        %767 = vmatprep.subr.mxu0 0.0
        %768 = vmatpush2.xpose.msra.mxu0 0.0
        %769 = vmatprep.subr.mxu0 0.0
        %770 = vmatpush2.xpose.msra.mxu0 0.0
        %771 = vmatprep.mubr.f32.mxu0 0.0
        %772 = vmatmul.mubr.f32.gmra.mxu0 %v703
        %v773 = vpop.f32.mrf.mxu0
        %v774 = vadd.f32 0.0, %v773
        %v775 = vpop.f32.mrf.mxu0
        %776 = vdwg.mxu0
        %v777 = vmul.f32 %v774, 0.35355338
        %v778 = vsel %vm457, %v777, -inf
        %779 = vmax.xlane.f32.xlu0 %v778
        %v780 = vpop.xlane.xlu0 %779
        %v781 = vsub.f32 %v777, %v780
        %v782 = vmul.f32 %v781, 1.442695
        %v783 = vpow.pop %v782
        %v784 = vsel %vm457, %v783, 0.0
        %785 = vadd.xlane.f32.xlu0 %v784
        %v786 = vpop.xlane.xlu0 %785
        %v787 = vrcp.pop %v786
        %v788 = vmul.f32 %v783, %v787
        %789 = vrot.lane.b32.xlu0 %v599, 80
        %v790 = vpop.permute.xlu0 %789
        %v793 = vsel %vm457, %v788, 0
        %795 = vmatprep.subr.mxu0 0.0
        %796 = vmatpush1.msra.mxu0 0.0
        %797 = vmatprep.subr.mxu0 0.0
        %798 = vmatpush1.msra.mxu0 0.0
        %799 = vmatprep.subr.mxu0 0.0
        %800 = vmatpush1.msra.mxu0 0.0
        %801 = vmatprep.subr.mxu0 0.0
        %802 = vmatpush1.msra.mxu0 0.0
        %803 = vmatprep.subr.mxu0 0.0
        %804 = vmatpush1.msra.mxu0 0.0
        %805 = vmatprep.subr.mxu0 0.0
        %806 = vmatpush1.msra.mxu0 0.0
        %807 = vmatprep.subr.mxu0 0.0
        %808 = vmatpush1.msra.mxu0 0.0
        %809 = vmatprep.subr.mxu0 0.0
        %810 = vmatpush1.msra.mxu0 0.0
        %811 = vmatprep.subr.mxu0 0.0
        %812 = vmatpush1.msra.mxu0 0.0
        %813 = vmatprep.subr.mxu0 0.0
        %814 = vmatpush1.msra.mxu0 0.0
        %815 = vmatprep.subr.mxu0 0.0
        %816 = vmatpush1.msra.mxu0 0.0
        %817 = vmatprep.subr.mxu0 0.0
        %818 = vmatpush1.msra.mxu0 0.0
        %819 = vmatprep.subr.mxu0 0.0
        %820 = vmatpush1.msra.mxu0 0.0
        %821 = vmatprep.subr.mxu0 0.0
        %822 = vmatpush1.msra.mxu0 0.0
        %823 = vmatprep.subr.mxu0 0.0
        %824 = vmatpush1.msra.mxu0 0.0
        %825 = vmatprep.subr.mxu0 0.0
        %826 = vmatpush1.msra.mxu0 %v790
        %827 = vmatprep.subr.mxu0 0.0
        %828 = vmatpush2.msra.mxu0 0.0
        %829 = vmatprep.subr.mxu0 0.0
        %830 = vmatpush2.msra.mxu0 0.0
        %831 = vmatprep.subr.mxu0 0.0
        %832 = vmatpush2.msra.mxu0 0.0
        %833 = vmatprep.subr.mxu0 0.0
        %834 = vmatpush2.msra.mxu0 0.0
        %835 = vmatprep.subr.mxu0 0.0
        %836 = vmatpush2.msra.mxu0 0.0
        %837 = vmatprep.subr.mxu0 0.0
        %838 = vmatpush2.msra.mxu0 0.0
        %839 = vmatprep.subr.mxu0 0.0
        %840 = vmatpush2.msra.mxu0 0.0
        %841 = vmatprep.subr.mxu0 0.0
        %842 = vmatpush2.msra.mxu0 0.0
        %843 = vmatprep.subr.mxu0 0.0
        %844 = vmatpush2.msra.mxu0 0.0
        %845 = vmatprep.subr.mxu0 0.0
        %846 = vmatpush2.msra.mxu0 0.0
        %847 = vmatprep.subr.mxu0 0.0
        %848 = vmatpush2.msra.mxu0 0.0
        %849 = vmatprep.subr.mxu0 0.0
        %850 = vmatpush2.msra.mxu0 0.0
        %851 = vmatprep.subr.mxu0 0.0
        %852 = vmatpush2.msra.mxu0 0.0
        %853 = vmatprep.subr.mxu0 0.0
        %854 = vmatpush2.msra.mxu0 0.0
        %855 = vmatprep.subr.mxu0 0.0
        %856 = vmatpush2.msra.mxu0 0.0
        %857 = vmatprep.subr.mxu0 0.0
        %858 = vmatpush2.msra.mxu0 0.0
        %859 = vmatprep.mubr.f32.mxu0 0.0
        %860 = vmatmul.mubr.f32.gmra.mxu0 %v793
        %v861 = vpop.f32.mrf.mxu0
        %v862 = vadd.f32 0.0, %v861
        %v863 = vpop.f32.mrf.mxu0
        %864 = vdwg.mxu0
        %v866 = vsel %vm457, %v862, 0
        %868 = vmatprep.subr.mxu0 0.0
        %869 = vmatpush1.msra.mxu0 0.0
        %870 = vmatprep.subr.mxu0 0.0
        %871 = vmatpush1.msra.mxu0 0.0
        %872 = vmatprep.subr.mxu0 0.0
        %873 = vmatpush1.msra.mxu0 0.0
        %874 = vmatprep.subr.mxu0 0.0
        %875 = vmatpush1.msra.mxu0 0.0
        %876 = vmatprep.subr.mxu0 0.0
        %877 = vmatpush1.msra.mxu0 0.0
        %878 = vmatprep.subr.mxu0 0.0
        %879 = vmatpush1.msra.mxu0 0.0
        %880 = vmatprep.subr.mxu0 0.0
        %881 = vmatpush1.msra.mxu0 0.0
        %882 = vmatprep.subr.mxu0 0.0
        %883 = vmatpush1.msra.mxu0 0.0
        %884 = vmatprep.subr.mxu0 0.0
        %885 = vmatpush1.msra.mxu0 0.0
        %886 = vmatprep.subr.mxu0 0.0
        %887 = vmatpush1.msra.mxu0 0.0
        %888 = vmatprep.subr.mxu0 0.0
        %889 = vmatpush1.msra.mxu0 0.0
        %890 = vmatprep.subr.mxu0 0.0
        %891 = vmatpush1.msra.mxu0 0.0
        %892 = vmatprep.subr.mxu0 0.0
        %893 = vmatpush1.msra.mxu0 0.0
        %894 = vmatprep.subr.mxu0 0.0
        %895 = vmatpush1.msra.mxu0 0.0
        %896 = vmatprep.subr.mxu0 0.0
        %897 = vmatpush1.msra.mxu0 0.0
        %898 = vmatprep.subr.mxu0 %v695
        %899 = vmatpush1.msra.mxu0 %v694
        %900 = vmatprep.subr.mxu0 0.0
        %901 = vmatpush2.msra.mxu0 0.0
        %902 = vmatprep.subr.mxu0 0.0
        %903 = vmatpush2.msra.mxu0 0.0
        %904 = vmatprep.subr.mxu0 0.0
        %905 = vmatpush2.msra.mxu0 0.0
        %906 = vmatprep.subr.mxu0 0.0
        %907 = vmatpush2.msra.mxu0 0.0
        %908 = vmatprep.subr.mxu0 0.0
        %909 = vmatpush2.msra.mxu0 0.0
        %910 = vmatprep.subr.mxu0 0.0
        %911 = vmatpush2.msra.mxu0 0.0
        %912 = vmatprep.subr.mxu0 0.0
        %913 = vmatpush2.msra.mxu0 0.0
        %914 = vmatprep.subr.mxu0 0.0
        %915 = vmatpush2.msra.mxu0 0.0
        %916 = vmatprep.subr.mxu0 0.0
        %917 = vmatpush2.msra.mxu0 0.0
        %918 = vmatprep.subr.mxu0 0.0
        %919 = vmatpush2.msra.mxu0 0.0
        %920 = vmatprep.subr.mxu0 0.0
        %921 = vmatpush2.msra.mxu0 0.0
        %922 = vmatprep.subr.mxu0 0.0
        %923 = vmatpush2.msra.mxu0 0.0
        %924 = vmatprep.subr.mxu0 0.0
        %925 = vmatpush2.msra.mxu0 0.0
        %926 = vmatprep.subr.mxu0 0.0
        %927 = vmatpush2.msra.mxu0 0.0
        %928 = vmatprep.subr.mxu0 0.0
        %929 = vmatpush2.msra.mxu0 0.0
        %930 = vmatprep.subr.mxu0 0.0
        %931 = vmatpush2.msra.mxu0 0.0
        %932 = vmatprep.mubr.f32.mxu0 0.0
        %933 = vmatmul.mubr.f32.gmra.mxu0 %v866
        %v934 = vpop.f32.mrf.mxu0
        %v935 = vadd.f32 0.0, %v934
        %v936 = vpop.f32.mrf.mxu0
        %v937 = vadd.f32 0.0, %v936
        %938 = vdwg.mxu0
        %v939 = vadd.f32 %v692, %v935
        %v940 = vadd.f32 %v693, %v937
        %941 = vrot.lane.b32.xlu0 %v599, 120
        %v942 = vpop.permute.xlu0 %941
        %943 = vrot.lane.b32.xlu0 %v599, 96
        %v944 = vpop.permute.xlu0 %943
        %v945 = vsel %vm457, %v942, 0
        %v947 = vsel %vm457, %v944, 0
        %949 = vmatprep.subr.mxu0 0.0
        %950 = vmatpush1.xpose.msra.mxu0 0.0
        %951 = vmatprep.subr.mxu0 0.0
        %952 = vmatpush1.xpose.msra.mxu0 0.0
        %953 = vmatprep.subr.mxu0 0.0
        %954 = vmatpush1.xpose.msra.mxu0 0.0
        %955 = vmatprep.subr.mxu0 0.0
        %956 = vmatpush1.xpose.msra.mxu0 0.0
        %957 = vmatprep.subr.mxu0 0.0
        %958 = vmatpush1.xpose.msra.mxu0 0.0
        %959 = vmatprep.subr.mxu0 0.0
        %960 = vmatpush1.xpose.msra.mxu0 0.0
        %961 = vmatprep.subr.mxu0 0.0
        %962 = vmatpush1.xpose.msra.mxu0 0.0
        %963 = vmatprep.subr.mxu0 0.0
        %964 = vmatpush1.xpose.msra.mxu0 0.0
        %965 = vmatprep.subr.mxu0 0.0
        %966 = vmatpush1.xpose.msra.mxu0 0.0
        %967 = vmatprep.subr.mxu0 0.0
        %968 = vmatpush1.xpose.msra.mxu0 0.0
        %969 = vmatprep.subr.mxu0 0.0
        %970 = vmatpush1.xpose.msra.mxu0 0.0
        %971 = vmatprep.subr.mxu0 0.0
        %972 = vmatpush1.xpose.msra.mxu0 0.0
        %973 = vmatprep.subr.mxu0 0.0
        %974 = vmatpush1.xpose.msra.mxu0 0.0
        %975 = vmatprep.subr.mxu0 0.0
        %976 = vmatpush1.xpose.msra.mxu0 0.0
        %977 = vmatprep.subr.mxu0 0.0
        %978 = vmatpush1.xpose.msra.mxu0 0.0
        %979 = vmatprep.subr.mxu0 0.0
        %980 = vmatpush1.xpose.msra.mxu0 %v947
        %981 = vmatprep.subr.mxu0 0.0
        %982 = vmatpush2.xpose.msra.mxu0 0.0
        %983 = vmatprep.subr.mxu0 0.0
        %984 = vmatpush2.xpose.msra.mxu0 0.0
        %985 = vmatprep.subr.mxu0 0.0
        %986 = vmatpush2.xpose.msra.mxu0 0.0
        %987 = vmatprep.subr.mxu0 0.0
        %988 = vmatpush2.xpose.msra.mxu0 0.0
        %989 = vmatprep.subr.mxu0 0.0
        %990 = vmatpush2.xpose.msra.mxu0 0.0
        %991 = vmatprep.subr.mxu0 0.0
        %992 = vmatpush2.xpose.msra.mxu0 0.0
        %993 = vmatprep.subr.mxu0 0.0
        %994 = vmatpush2.xpose.msra.mxu0 0.0
        %995 = vmatprep.subr.mxu0 0.0
        %996 = vmatpush2.xpose.msra.mxu0 0.0
        %997 = vmatprep.subr.mxu0 0.0
        %998 = vmatpush2.xpose.msra.mxu0 0.0
        %999 = vmatprep.subr.mxu0 0.0
        %1000 = vmatpush2.xpose.msra.mxu0 0.0
        %1001 = vmatprep.subr.mxu0 0.0
        %1002 = vmatpush2.xpose.msra.mxu0 0.0
        %1003 = vmatprep.subr.mxu0 0.0
        %1004 = vmatpush2.xpose.msra.mxu0 0.0
        %1005 = vmatprep.subr.mxu0 0.0
        %1006 = vmatpush2.xpose.msra.mxu0 0.0
        %1007 = vmatprep.subr.mxu0 0.0
        %1008 = vmatpush2.xpose.msra.mxu0 0.0
        %1009 = vmatprep.subr.mxu0 0.0
        %1010 = vmatpush2.xpose.msra.mxu0 0.0
        %1011 = vmatprep.subr.mxu0 0.0
        %1012 = vmatpush2.xpose.msra.mxu0 0.0
        %1013 = vmatprep.mubr.f32.mxu0 0.0
        %1014 = vmatmul.mubr.f32.gmra.mxu0 %v945
        %v1015 = vpop.f32.mrf.mxu0
        %v1016 = vadd.f32 0.0, %v1015
        %v1017 = vpop.f32.mrf.mxu0
        %1018 = vdwg.mxu0
        %v1019 = vmul.f32 %v1016, 0.35355338
        %v1020 = vsel %vm457, %v1019, -inf
        %1021 = vmax.xlane.f32.xlu0 %v1020
        %v1022 = vpop.xlane.xlu0 %1021
        %v1023 = vsub.f32 %v1019, %v1022
        %v1024 = vmul.f32 %v1023, 1.442695
        %v1025 = vpow.pop %v1024
        %v1026 = vsel %vm457, %v1025, 0.0
        %1027 = vadd.xlane.f32.xlu0 %v1026
        %v1028 = vpop.xlane.xlu0 %1027
        %v1029 = vrcp.pop %v1028
        %v1030 = vmul.f32 %v1025, %v1029
        %1031 = vrot.lane.b32.xlu0 %v599, 72
        %v1032 = vpop.permute.xlu0 %1031
        %v1035 = vsel %vm457, %v1030, 0
        %1037 = vmatprep.subr.mxu0 0.0
        %1038 = vmatpush1.msra.mxu0 0.0
        %1039 = vmatprep.subr.mxu0 0.0
        %1040 = vmatpush1.msra.mxu0 0.0
        %1041 = vmatprep.subr.mxu0 0.0
        %1042 = vmatpush1.msra.mxu0 0.0
        %1043 = vmatprep.subr.mxu0 0.0
        %1044 = vmatpush1.msra.mxu0 0.0
        %1045 = vmatprep.subr.mxu0 0.0
        %1046 = vmatpush1.msra.mxu0 0.0
        %1047 = vmatprep.subr.mxu0 0.0
        %1048 = vmatpush1.msra.mxu0 0.0
        %1049 = vmatprep.subr.mxu0 0.0
        %1050 = vmatpush1.msra.mxu0 0.0
        %1051 = vmatprep.subr.mxu0 0.0
        %1052 = vmatpush1.msra.mxu0 0.0
        %1053 = vmatprep.subr.mxu0 0.0
        %1054 = vmatpush1.msra.mxu0 0.0
        %1055 = vmatprep.subr.mxu0 0.0
        %1056 = vmatpush1.msra.mxu0 0.0
        %1057 = vmatprep.subr.mxu0 0.0
        %1058 = vmatpush1.msra.mxu0 0.0
        %1059 = vmatprep.subr.mxu0 0.0
        %1060 = vmatpush1.msra.mxu0 0.0
        %1061 = vmatprep.subr.mxu0 0.0
        %1062 = vmatpush1.msra.mxu0 0.0
        %1063 = vmatprep.subr.mxu0 0.0
        %1064 = vmatpush1.msra.mxu0 0.0
        %1065 = vmatprep.subr.mxu0 0.0
        %1066 = vmatpush1.msra.mxu0 0.0
        %1067 = vmatprep.subr.mxu0 0.0
        %1068 = vmatpush1.msra.mxu0 %v1032
        %1069 = vmatprep.subr.mxu0 0.0
        %1070 = vmatpush2.msra.mxu0 0.0
        %1071 = vmatprep.subr.mxu0 0.0
        %1072 = vmatpush2.msra.mxu0 0.0
        %1073 = vmatprep.subr.mxu0 0.0
        %1074 = vmatpush2.msra.mxu0 0.0
        %1075 = vmatprep.subr.mxu0 0.0
        %1076 = vmatpush2.msra.mxu0 0.0
        %1077 = vmatprep.subr.mxu0 0.0
        %1078 = vmatpush2.msra.mxu0 0.0
        %1079 = vmatprep.subr.mxu0 0.0
        %1080 = vmatpush2.msra.mxu0 0.0
        %1081 = vmatprep.subr.mxu0 0.0
        %1082 = vmatpush2.msra.mxu0 0.0
        %1083 = vmatprep.subr.mxu0 0.0
        %1084 = vmatpush2.msra.mxu0 0.0
        %1085 = vmatprep.subr.mxu0 0.0
        %1086 = vmatpush2.msra.mxu0 0.0
        %1087 = vmatprep.subr.mxu0 0.0
        %1088 = vmatpush2.msra.mxu0 0.0
        %1089 = vmatprep.subr.mxu0 0.0
        %1090 = vmatpush2.msra.mxu0 0.0
        %1091 = vmatprep.subr.mxu0 0.0
        %1092 = vmatpush2.msra.mxu0 0.0
        %1093 = vmatprep.subr.mxu0 0.0
        %1094 = vmatpush2.msra.mxu0 0.0
        %1095 = vmatprep.subr.mxu0 0.0
        %1096 = vmatpush2.msra.mxu0 0.0
        %1097 = vmatprep.subr.mxu0 0.0
        %1098 = vmatpush2.msra.mxu0 0.0
        %1099 = vmatprep.subr.mxu0 0.0
        %1100 = vmatpush2.msra.mxu0 0.0
        %1101 = vmatprep.mubr.f32.mxu0 0.0
        %1102 = vmatmul.mubr.f32.gmra.mxu0 %v1035
        %v1103 = vpop.f32.mrf.mxu0
        %v1104 = vadd.f32 0.0, %v1103
        %v1105 = vpop.f32.mrf.mxu0
        %1106 = vdwg.mxu0
        %v1108 = vsel %vm457, %v1104, 0
        %1110 = vmatprep.subr.mxu0 0.0
        %1111 = vmatpush1.msra.mxu0 0.0
        %1112 = vmatprep.subr.mxu0 0.0
        %1113 = vmatpush1.msra.mxu0 0.0
        %1114 = vmatprep.subr.mxu0 0.0
        %1115 = vmatpush1.msra.mxu0 0.0
        %1116 = vmatprep.subr.mxu0 0.0
        %1117 = vmatpush1.msra.mxu0 0.0
        %1118 = vmatprep.subr.mxu0 0.0
        %1119 = vmatpush1.msra.mxu0 0.0
        %1120 = vmatprep.subr.mxu0 0.0
        %1121 = vmatpush1.msra.mxu0 0.0
        %1122 = vmatprep.subr.mxu0 0.0
        %1123 = vmatpush1.msra.mxu0 0.0
        %1124 = vmatprep.subr.mxu0 0.0
        %1125 = vmatpush1.msra.mxu0 0.0
        %1126 = vmatprep.subr.mxu0 0.0
        %1127 = vmatpush1.msra.mxu0 0.0
        %1128 = vmatprep.subr.mxu0 0.0
        %1129 = vmatpush1.msra.mxu0 0.0
        %1130 = vmatprep.subr.mxu0 0.0
        %1131 = vmatpush1.msra.mxu0 0.0
        %1132 = vmatprep.subr.mxu0 0.0
        %1133 = vmatpush1.msra.mxu0 0.0
        %1134 = vmatprep.subr.mxu0 0.0
        %1135 = vmatpush1.msra.mxu0 0.0
        %1136 = vmatprep.subr.mxu0 0.0
        %1137 = vmatpush1.msra.mxu0 0.0
        %1138 = vmatprep.subr.mxu0 0.0
        %1139 = vmatpush1.msra.mxu0 0.0
        %1140 = vmatprep.subr.mxu0 %v697
        %1141 = vmatpush1.msra.mxu0 %v696
        %1142 = vmatprep.subr.mxu0 0.0
        %1143 = vmatpush2.msra.mxu0 0.0
        %1144 = vmatprep.subr.mxu0 0.0
        %1145 = vmatpush2.msra.mxu0 0.0
        %1146 = vmatprep.subr.mxu0 0.0
        %1147 = vmatpush2.msra.mxu0 0.0
        %1148 = vmatprep.subr.mxu0 0.0
        %1149 = vmatpush2.msra.mxu0 0.0
        %1150 = vmatprep.subr.mxu0 0.0
        %1151 = vmatpush2.msra.mxu0 0.0
        %1152 = vmatprep.subr.mxu0 0.0
        %1153 = vmatpush2.msra.mxu0 0.0
        %1154 = vmatprep.subr.mxu0 0.0
        %1155 = vmatpush2.msra.mxu0 0.0
        %1156 = vmatprep.subr.mxu0 0.0
        %1157 = vmatpush2.msra.mxu0 0.0
        %1158 = vmatprep.subr.mxu0 0.0
        %1159 = vmatpush2.msra.mxu0 0.0
        %1160 = vmatprep.subr.mxu0 0.0
        %1161 = vmatpush2.msra.mxu0 0.0
        %1162 = vmatprep.subr.mxu0 0.0
        %1163 = vmatpush2.msra.mxu0 0.0
        %1164 = vmatprep.subr.mxu0 0.0
        %1165 = vmatpush2.msra.mxu0 0.0
        %1166 = vmatprep.subr.mxu0 0.0
        %1167 = vmatpush2.msra.mxu0 0.0
        %1168 = vmatprep.subr.mxu0 0.0
        %1169 = vmatpush2.msra.mxu0 0.0
        %1170 = vmatprep.subr.mxu0 0.0
        %1171 = vmatpush2.msra.mxu0 0.0
        %1172 = vmatprep.subr.mxu0 0.0
        %1173 = vmatpush2.msra.mxu0 0.0
        %1174 = vmatprep.mubr.f32.mxu0 0.0
        %1175 = vmatmul.mubr.f32.gmra.mxu0 %v1108
        %v1176 = vpop.f32.mrf.mxu0
        %v1177 = vadd.f32 0.0, %v1176
        %v1178 = vpop.f32.mrf.mxu0
        %v1179 = vadd.f32 0.0, %v1178
        %1180 = vdwg.mxu0
        %v1181 = vadd.f32 %v939, %v1177
        %v1182 = vadd.f32 %v940, %v1179
        %1183 = vrot.lane.b32.xlu0 %v599, 112
        %v1184 = vpop.permute.xlu0 %1183
        %1185 = vrot.lane.b32.xlu0 %v599, 88
        %v1186 = vpop.permute.xlu0 %1185
        %v1187 = vsel %vm457, %v1184, 0
        %v1189 = vsel %vm457, %v1186, 0
        %1191 = vmatprep.subr.mxu0 0.0
        %1192 = vmatpush1.xpose.msra.mxu0 0.0
        %1193 = vmatprep.subr.mxu0 0.0
        %1194 = vmatpush1.xpose.msra.mxu0 0.0
        %1195 = vmatprep.subr.mxu0 0.0
        %1196 = vmatpush1.xpose.msra.mxu0 0.0
        %1197 = vmatprep.subr.mxu0 0.0
        %1198 = vmatpush1.xpose.msra.mxu0 0.0
        %1199 = vmatprep.subr.mxu0 0.0
        %1200 = vmatpush1.xpose.msra.mxu0 0.0
        %1201 = vmatprep.subr.mxu0 0.0
        %1202 = vmatpush1.xpose.msra.mxu0 0.0
        %1203 = vmatprep.subr.mxu0 0.0
        %1204 = vmatpush1.xpose.msra.mxu0 0.0
        %1205 = vmatprep.subr.mxu0 0.0
        %1206 = vmatpush1.xpose.msra.mxu0 0.0
        %1207 = vmatprep.subr.mxu0 0.0
        %1208 = vmatpush1.xpose.msra.mxu0 0.0
        %1209 = vmatprep.subr.mxu0 0.0
        %1210 = vmatpush1.xpose.msra.mxu0 0.0
        %1211 = vmatprep.subr.mxu0 0.0
        %1212 = vmatpush1.xpose.msra.mxu0 0.0
        %1213 = vmatprep.subr.mxu0 0.0
        %1214 = vmatpush1.xpose.msra.mxu0 0.0
        %1215 = vmatprep.subr.mxu0 0.0
        %1216 = vmatpush1.xpose.msra.mxu0 0.0
        %1217 = vmatprep.subr.mxu0 0.0
        %1218 = vmatpush1.xpose.msra.mxu0 0.0
        %1219 = vmatprep.subr.mxu0 0.0
        %1220 = vmatpush1.xpose.msra.mxu0 0.0
        %1221 = vmatprep.subr.mxu0 0.0
        %1222 = vmatpush1.xpose.msra.mxu0 %v1189
        %1223 = vmatprep.subr.mxu0 0.0
        %1224 = vmatpush2.xpose.msra.mxu0 0.0
        %1225 = vmatprep.subr.mxu0 0.0
        %1226 = vmatpush2.xpose.msra.mxu0 0.0
        %1227 = vmatprep.subr.mxu0 0.0
        %1228 = vmatpush2.xpose.msra.mxu0 0.0
        %1229 = vmatprep.subr.mxu0 0.0
        %1230 = vmatpush2.xpose.msra.mxu0 0.0
        %1231 = vmatprep.subr.mxu0 0.0
        %1232 = vmatpush2.xpose.msra.mxu0 0.0
        %1233 = vmatprep.subr.mxu0 0.0
        %1234 = vmatpush2.xpose.msra.mxu0 0.0
        %1235 = vmatprep.subr.mxu0 0.0
        %1236 = vmatpush2.xpose.msra.mxu0 0.0
        %1237 = vmatprep.subr.mxu0 0.0
        %1238 = vmatpush2.xpose.msra.mxu0 0.0
        %1239 = vmatprep.subr.mxu0 0.0
        %1240 = vmatpush2.xpose.msra.mxu0 0.0
        %1241 = vmatprep.subr.mxu0 0.0
        %1242 = vmatpush2.xpose.msra.mxu0 0.0
        %1243 = vmatprep.subr.mxu0 0.0
        %1244 = vmatpush2.xpose.msra.mxu0 0.0
        %1245 = vmatprep.subr.mxu0 0.0
        %1246 = vmatpush2.xpose.msra.mxu0 0.0
        %1247 = vmatprep.subr.mxu0 0.0
        %1248 = vmatpush2.xpose.msra.mxu0 0.0
        %1249 = vmatprep.subr.mxu0 0.0
        %1250 = vmatpush2.xpose.msra.mxu0 0.0
        %1251 = vmatprep.subr.mxu0 0.0
        %1252 = vmatpush2.xpose.msra.mxu0 0.0
        %1253 = vmatprep.subr.mxu0 0.0
        %1254 = vmatpush2.xpose.msra.mxu0 0.0
        %1255 = vmatprep.mubr.f32.mxu0 0.0
        %1256 = vmatmul.mubr.f32.gmra.mxu0 %v1187
        %v1257 = vpop.f32.mrf.mxu0
        %v1258 = vadd.f32 0.0, %v1257
        %v1259 = vpop.f32.mrf.mxu0
        %1260 = vdwg.mxu0
        %v1261 = vmul.f32 %v1258, 0.35355338
        %v1262 = vsel %vm457, %v1261, -inf
        %1263 = vmax.xlane.f32.xlu0 %v1262
        %v1264 = vpop.xlane.xlu0 %1263
        %v1265 = vsub.f32 %v1261, %v1264
        %v1266 = vmul.f32 %v1265, 1.442695
        %v1267 = vpow.pop %v1266
        %v1268 = vsel %vm457, %v1267, 0.0
        %1269 = vadd.xlane.f32.xlu0 %v1268
        %v1270 = vpop.xlane.xlu0 %1269
        %v1271 = vrcp.pop %v1270
        %v1272 = vmul.f32 %v1267, %v1271
        %1273 = vrot.lane.b32.xlu0 %v599, 64
        %v1274 = vpop.permute.xlu0 %1273
        %v1277 = vsel %vm457, %v1272, 0
        %1279 = vmatprep.subr.mxu0 0.0
        %1280 = vmatpush1.msra.mxu0 0.0
        %1281 = vmatprep.subr.mxu0 0.0
        %1282 = vmatpush1.msra.mxu0 0.0
        %1283 = vmatprep.subr.mxu0 0.0
        %1284 = vmatpush1.msra.mxu0 0.0
        %1285 = vmatprep.subr.mxu0 0.0
        %1286 = vmatpush1.msra.mxu0 0.0
        %1287 = vmatprep.subr.mxu0 0.0
        %1288 = vmatpush1.msra.mxu0 0.0
        %1289 = vmatprep.subr.mxu0 0.0
        %1290 = vmatpush1.msra.mxu0 0.0
        %1291 = vmatprep.subr.mxu0 0.0
        %1292 = vmatpush1.msra.mxu0 0.0
        %1293 = vmatprep.subr.mxu0 0.0
        %1294 = vmatpush1.msra.mxu0 0.0
        %1295 = vmatprep.subr.mxu0 0.0
        %1296 = vmatpush1.msra.mxu0 0.0
        %1297 = vmatprep.subr.mxu0 0.0
        %1298 = vmatpush1.msra.mxu0 0.0
        %1299 = vmatprep.subr.mxu0 0.0
        %1300 = vmatpush1.msra.mxu0 0.0
        %1301 = vmatprep.subr.mxu0 0.0
        %1302 = vmatpush1.msra.mxu0 0.0
        %1303 = vmatprep.subr.mxu0 0.0
        %1304 = vmatpush1.msra.mxu0 0.0
        %1305 = vmatprep.subr.mxu0 0.0
        %1306 = vmatpush1.msra.mxu0 0.0
        %1307 = vmatprep.subr.mxu0 0.0
        %1308 = vmatpush1.msra.mxu0 0.0
        %1309 = vmatprep.subr.mxu0 0.0
        %1310 = vmatpush1.msra.mxu0 %v1274
        %1311 = vmatprep.subr.mxu0 0.0
        %1312 = vmatpush2.msra.mxu0 0.0
        %1313 = vmatprep.subr.mxu0 0.0
        %1314 = vmatpush2.msra.mxu0 0.0
        %1315 = vmatprep.subr.mxu0 0.0
        %1316 = vmatpush2.msra.mxu0 0.0
        %1317 = vmatprep.subr.mxu0 0.0
        %1318 = vmatpush2.msra.mxu0 0.0
        %1319 = vmatprep.subr.mxu0 0.0
        %1320 = vmatpush2.msra.mxu0 0.0
        %1321 = vmatprep.subr.mxu0 0.0
        %1322 = vmatpush2.msra.mxu0 0.0
        %1323 = vmatprep.subr.mxu0 0.0
        %1324 = vmatpush2.msra.mxu0 0.0
        %1325 = vmatprep.subr.mxu0 0.0
        %1326 = vmatpush2.msra.mxu0 0.0
        %1327 = vmatprep.subr.mxu0 0.0
        %1328 = vmatpush2.msra.mxu0 0.0
        %1329 = vmatprep.subr.mxu0 0.0
        %1330 = vmatpush2.msra.mxu0 0.0
        %1331 = vmatprep.subr.mxu0 0.0
        %1332 = vmatpush2.msra.mxu0 0.0
        %1333 = vmatprep.subr.mxu0 0.0
        %1334 = vmatpush2.msra.mxu0 0.0
        %1335 = vmatprep.subr.mxu0 0.0
        %1336 = vmatpush2.msra.mxu0 0.0
        %1337 = vmatprep.subr.mxu0 0.0
        %1338 = vmatpush2.msra.mxu0 0.0
        %1339 = vmatprep.subr.mxu0 0.0
        %1340 = vmatpush2.msra.mxu0 0.0
        %1341 = vmatprep.subr.mxu0 0.0
        %1342 = vmatpush2.msra.mxu0 0.0
        %1343 = vmatprep.mubr.f32.mxu0 0.0
        %1344 = vmatmul.mubr.f32.gmra.mxu0 %v1277
        %v1345 = vpop.f32.mrf.mxu0
        %v1346 = vadd.f32 0.0, %v1345
        %v1347 = vpop.f32.mrf.mxu0
        %1348 = vdwg.mxu0
        %v1350 = vsel %vm457, %v1346, 0
        %1352 = vmatprep.subr.mxu0 0.0
        %1353 = vmatpush1.msra.mxu0 0.0
        %1354 = vmatprep.subr.mxu0 0.0
        %1355 = vmatpush1.msra.mxu0 0.0
        %1356 = vmatprep.subr.mxu0 0.0
        %1357 = vmatpush1.msra.mxu0 0.0
        %1358 = vmatprep.subr.mxu0 0.0
        %1359 = vmatpush1.msra.mxu0 0.0
        %1360 = vmatprep.subr.mxu0 0.0
        %1361 = vmatpush1.msra.mxu0 0.0
        %1362 = vmatprep.subr.mxu0 0.0
        %1363 = vmatpush1.msra.mxu0 0.0
        %1364 = vmatprep.subr.mxu0 0.0
        %1365 = vmatpush1.msra.mxu0 0.0
        %1366 = vmatprep.subr.mxu0 0.0
        %1367 = vmatpush1.msra.mxu0 0.0
        %1368 = vmatprep.subr.mxu0 0.0
        %1369 = vmatpush1.msra.mxu0 0.0
        %1370 = vmatprep.subr.mxu0 0.0
        %1371 = vmatpush1.msra.mxu0 0.0
        %1372 = vmatprep.subr.mxu0 0.0
        %1373 = vmatpush1.msra.mxu0 0.0
        %1374 = vmatprep.subr.mxu0 0.0
        %1375 = vmatpush1.msra.mxu0 0.0
        %1376 = vmatprep.subr.mxu0 0.0
        %1377 = vmatpush1.msra.mxu0 0.0
        %1378 = vmatprep.subr.mxu0 0.0
        %1379 = vmatpush1.msra.mxu0 0.0
        %1380 = vmatprep.subr.mxu0 0.0
        %1381 = vmatpush1.msra.mxu0 0.0
        %1382 = vmatprep.subr.mxu0 %v699
        %1383 = vmatpush1.msra.mxu0 %v698
        %1384 = vmatprep.subr.mxu0 0.0
        %1385 = vmatpush2.msra.mxu0 0.0
        %1386 = vmatprep.subr.mxu0 0.0
        %1387 = vmatpush2.msra.mxu0 0.0
        %1388 = vmatprep.subr.mxu0 0.0
        %1389 = vmatpush2.msra.mxu0 0.0
        %1390 = vmatprep.subr.mxu0 0.0
        %1391 = vmatpush2.msra.mxu0 0.0
        %1392 = vmatprep.subr.mxu0 0.0
        %1393 = vmatpush2.msra.mxu0 0.0
        %1394 = vmatprep.subr.mxu0 0.0
        %1395 = vmatpush2.msra.mxu0 0.0
        %1396 = vmatprep.subr.mxu0 0.0
        %1397 = vmatpush2.msra.mxu0 0.0
        %1398 = vmatprep.subr.mxu0 0.0
        %1399 = vmatpush2.msra.mxu0 0.0
        %1400 = vmatprep.subr.mxu0 0.0
        %1401 = vmatpush2.msra.mxu0 0.0
        %1402 = vmatprep.subr.mxu0 0.0
        %1403 = vmatpush2.msra.mxu0 0.0
        %1404 = vmatprep.subr.mxu0 0.0
        %1405 = vmatpush2.msra.mxu0 0.0
        %1406 = vmatprep.subr.mxu0 0.0
        %1407 = vmatpush2.msra.mxu0 0.0
        %1408 = vmatprep.subr.mxu0 0.0
        %1409 = vmatpush2.msra.mxu0 0.0
        %1410 = vmatprep.subr.mxu0 0.0
        %1411 = vmatpush2.msra.mxu0 0.0
        %1412 = vmatprep.subr.mxu0 0.0
        %1413 = vmatpush2.msra.mxu0 0.0
        %1414 = vmatprep.subr.mxu0 0.0
        %1415 = vmatpush2.msra.mxu0 0.0
        %1416 = vmatprep.mubr.f32.mxu0 0.0
        %1417 = vmatmul.mubr.f32.gmra.mxu0 %v1350
        %v1418 = vpop.f32.mrf.mxu0
        %v1419 = vadd.f32 0.0, %v1418
        %v1420 = vpop.f32.mrf.mxu0
        %v1421 = vadd.f32 0.0, %v1420
        %1422 = vdwg.mxu0
        %v1423 = vadd.f32 %v1181, %v1419
        %v1424 = vadd.f32 %v1182, %v1421
        %v1425 = vmax.f32 %v1423, 0.0
        %v1426 = vmax.f32 %v1424, 0.0
        %v1427 = vld [vmem:[#allocation9] sm:$0xff]
        %v1428 = vld [vmem:[#allocation9 + $0x8] sm:$0xff]
        %v1429 = vld [vmem:[#allocation9 + $0x10] sm:$0xff]
        %v1430 = vld [vmem:[#allocation9 + $0x18] sm:$0xff]
        %v1431 = vld [vmem:[#allocation9 + $0x20] sm:$0xff]
        %v1432 = vld [vmem:[#allocation9 + $0x28] sm:$0xff]
        %v1433 = vld [vmem:[#allocation9 + $0x30] sm:$0xff]
        %v1434 = vld [vmem:[#allocation9 + $0x38] sm:$0xff]
        %v1435 = vld [vmem:[#allocation9 + $0x40] sm:$0xff]
        %v1436 = vld [vmem:[#allocation9 + $0x48] sm:$0xff]
        %v1437 = vld [vmem:[#allocation9 + $0x50] sm:$0xff]
        %v1438 = vld [vmem:[#allocation9 + $0x58] sm:$0xff]
        %v1439 = vld [vmem:[#allocation9 + $0x60] sm:$0xff]
        %v1440 = vld [vmem:[#allocation9 + $0x68] sm:$0xff]
        %v1441 = vld [vmem:[#allocation9 + $0x70] sm:$0xff]
        %v1442 = vld [vmem:[#allocation9 + $0x78] sm:$0xff]
        %v1443 = vld [vmem:[#allocation9 + $0x80] sm:$0xff]
        %v1444 = vld [vmem:[#allocation9 + $0x88] sm:$0xff]
        %v1445 = vld [vmem:[#allocation9 + $0x90] sm:$0xff]
        %v1446 = vld [vmem:[#allocation9 + $0x98] sm:$0xff]
        %v1447 = vld [vmem:[#allocation9 + $0xa0] sm:$0xff]
        %v1448 = vld [vmem:[#allocation9 + $0xa8] sm:$0xff]
        %v1449 = vld [vmem:[#allocation9 + $0xb0] sm:$0xff]
        %v1450 = vld [vmem:[#allocation9 + $0xb8] sm:$0xff]
        %v1451 = vld [vmem:[#allocation9 + $0xc0] sm:$0xff]
        %v1452 = vld [vmem:[#allocation9 + $0xc8] sm:$0xff]
        %v1453 = vld [vmem:[#allocation9 + $0xd0] sm:$0xff]
        %v1454 = vld [vmem:[#allocation9 + $0xd8] sm:$0xff]
        %v1455 = vld [vmem:[#allocation9 + $0xe0] sm:$0xff]
        %v1456 = vld [vmem:[#allocation9 + $0xe8] sm:$0xff]
        %v1457 = vld [vmem:[#allocation9 + $0xf0] sm:$0xff]
        %v1458 = vld [vmem:[#allocation9 + $0xf8] sm:$0xff]
        %v1459 = vld [vmem:[#allocation9 + $0x100] sm:$0xff]
        %v1460 = vld [vmem:[#allocation9 + $0x108] sm:$0xff]
        %v1461 = vld [vmem:[#allocation9 + $0x110] sm:$0xff]
        %v1462 = vld [vmem:[#allocation9 + $0x118] sm:$0xff]
        %v1463 = vld [vmem:[#allocation9 + $0x120] sm:$0xff]
        %v1464 = vld [vmem:[#allocation9 + $0x128] sm:$0xff]
        %v1465 = vld [vmem:[#allocation9 + $0x130] sm:$0xff]
        %v1466 = vld [vmem:[#allocation9 + $0x138] sm:$0xff]
        %v1467 = vld [vmem:[#allocation9 + $0x140] sm:$0xff]
        %v1468 = vld [vmem:[#allocation9 + $0x148] sm:$0xff]
        %v1469 = vld [vmem:[#allocation9 + $0x150] sm:$0xff]
        %v1470 = vld [vmem:[#allocation9 + $0x158] sm:$0xff]
        %v1471 = vld [vmem:[#allocation9 + $0x160] sm:$0xff]
        %v1472 = vld [vmem:[#allocation9 + $0x168] sm:$0xff]
        %v1473 = vld [vmem:[#allocation9 + $0x170] sm:$0xff]
        %v1474 = vld [vmem:[#allocation9 + $0x178] sm:$0xff]
        %v1475 = vld [vmem:[#allocation9 + $0x180] sm:$0xff]
        %v1476 = vld [vmem:[#allocation9 + $0x188] sm:$0xff]
        %v1477 = vld [vmem:[#allocation9 + $0x190] sm:$0xff]
        %v1478 = vld [vmem:[#allocation9 + $0x198] sm:$0xff]
        %v1479 = vld [vmem:[#allocation9 + $0x1a0] sm:$0xff]
        %v1480 = vld [vmem:[#allocation9 + $0x1a8] sm:$0xff]
        %v1481 = vld [vmem:[#allocation9 + $0x1b0] sm:$0xff]
        %v1482 = vld [vmem:[#allocation9 + $0x1b8] sm:$0xff]
        %v1483 = vld [vmem:[#allocation9 + $0x1c0] sm:$0xff]
        %v1484 = vld [vmem:[#allocation9 + $0x1c8] sm:$0xff]
        %v1485 = vld [vmem:[#allocation9 + $0x1d0] sm:$0xff]
        %v1486 = vld [vmem:[#allocation9 + $0x1d8] sm:$0xff]
        %v1487 = vld [vmem:[#allocation9 + $0x1e0] sm:$0xff]
        %v1488 = vld [vmem:[#allocation9 + $0x1e8] sm:$0xff]
        %v1489 = vld [vmem:[#allocation9 + $0x1f0] sm:$0xff]
        %v1490 = vld [vmem:[#allocation9 + $0x1f8] sm:$0xff]
        %v1491 = vld [vmem:[%s7] sm:$0x3]
        %v1493 = vlaneseq
        %v1494 = vshrl.u32 %v1493, 7
        %v1495 = vsub.s32 0, %v1494
        %v1496 = vrot.slane %v1491, %v1495
        %v1497 = vlaneseq
        %v1498 = vshrl.u32 %v1497, 7
        %v1499 = vsub.s32 1, %v1498
        %v1500 = vrot.slane %v1491, %v1499
        %1503 = vmatprep.subr.mxu0 %v1458
        %1504 = vmatpush1.msra.mxu0 %v1457
        %1505 = vmatprep.subr.mxu0 %v1456
        %1506 = vmatpush1.msra.mxu0 %v1455
        %1507 = vmatprep.subr.mxu0 %v1454
        %1508 = vmatpush1.msra.mxu0 %v1453
        %1509 = vmatprep.subr.mxu0 %v1452
        %1510 = vmatpush1.msra.mxu0 %v1451
        %1511 = vmatprep.subr.mxu0 %v1450
        %1512 = vmatpush1.msra.mxu0 %v1449
        %1513 = vmatprep.subr.mxu0 %v1448
        %1514 = vmatpush1.msra.mxu0 %v1447
        %1515 = vmatprep.subr.mxu0 %v1446
        %1516 = vmatpush1.msra.mxu0 %v1445
        %1517 = vmatprep.subr.mxu0 %v1444
        %1518 = vmatpush1.msra.mxu0 %v1443
        %1519 = vmatprep.subr.mxu0 %v1442
        %1520 = vmatpush1.msra.mxu0 %v1441
        %1521 = vmatprep.subr.mxu0 %v1440
        %1522 = vmatpush1.msra.mxu0 %v1439
        %1523 = vmatprep.subr.mxu0 %v1438
        %1524 = vmatpush1.msra.mxu0 %v1437
        %1525 = vmatprep.subr.mxu0 %v1436
        %1526 = vmatpush1.msra.mxu0 %v1435
        %1527 = vmatprep.subr.mxu0 %v1434
        %1528 = vmatpush1.msra.mxu0 %v1433
        %1529 = vmatprep.subr.mxu0 %v1432
        %1530 = vmatpush1.msra.mxu0 %v1431
        %1531 = vmatprep.subr.mxu0 %v1430
        %1532 = vmatpush1.msra.mxu0 %v1429
        %1533 = vmatprep.subr.mxu0 %v1428
        %1534 = vmatpush1.msra.mxu0 %v1427
        %1535 = vmatprep.subr.mxu0 %v1490
        %1536 = vmatpush2.msra.mxu0 %v1489
        %1537 = vmatprep.subr.mxu0 %v1488
        %1538 = vmatpush2.msra.mxu0 %v1487
        %1539 = vmatprep.subr.mxu0 %v1486
        %1540 = vmatpush2.msra.mxu0 %v1485
        %1541 = vmatprep.subr.mxu0 %v1484
        %1542 = vmatpush2.msra.mxu0 %v1483
        %1543 = vmatprep.subr.mxu0 %v1482
        %1544 = vmatpush2.msra.mxu0 %v1481
        %1545 = vmatprep.subr.mxu0 %v1480
        %1546 = vmatpush2.msra.mxu0 %v1479
        %1547 = vmatprep.subr.mxu0 %v1478
        %1548 = vmatpush2.msra.mxu0 %v1477
        %1549 = vmatprep.subr.mxu0 %v1476
        %1550 = vmatpush2.msra.mxu0 %v1475
        %1551 = vmatprep.subr.mxu0 %v1474
        %1552 = vmatpush2.msra.mxu0 %v1473
        %1553 = vmatprep.subr.mxu0 %v1472
        %1554 = vmatpush2.msra.mxu0 %v1471
        %1555 = vmatprep.subr.mxu0 %v1470
        %1556 = vmatpush2.msra.mxu0 %v1469
        %1557 = vmatprep.subr.mxu0 %v1468
        %1558 = vmatpush2.msra.mxu0 %v1467
        %1559 = vmatprep.subr.mxu0 %v1466
        %1560 = vmatpush2.msra.mxu0 %v1465
        %1561 = vmatprep.subr.mxu0 %v1464
        %1562 = vmatpush2.msra.mxu0 %v1463
        %1563 = vmatprep.subr.mxu0 %v1462
        %1564 = vmatpush2.msra.mxu0 %v1461
        %1565 = vmatprep.subr.mxu0 %v1460
        %1566 = vmatpush2.msra.mxu0 %v1459
        %1567 = vmatprep.mubr.f32.mxu0 %v1426
        %1568 = vmatmul.mubr.f32.gmra.mxu0 %v1425
        %v1569 = vpop.f32.mrf.mxu0
        %v1570 = vadd.f32 %v1496, %v1569
        %v1571 = vpop.f32.mrf.mxu0
        %v1572 = vadd.f32 %v1500, %v1571
        %1573 = vdwg.mxu0
        %v1574 = vmax.f32 %v1570, 0.0
        %v1575 = vmax.f32 %v1572, 0.0
        %v1576 = vld [vmem:[%s8] sm:$0x3]
        %v1578 = vlaneseq
        %v1579 = vshrl.u32 %v1578, 7
        %v1580 = vsub.s32 0, %v1579
        %v1581 = vrot.slane %v1576, %v1580
        %v1582 = vlaneseq
        %v1583 = vshrl.u32 %v1582, 7
        %v1584 = vsub.s32 1, %v1583
        %v1585 = vrot.slane %v1576, %v1584
        %v1588 = vmul.f32 %v1574, %v1581
        %v1589 = vmul.f32 %v1575, %v1585
        %v1590 = vadd.f32 %v1588, %v1589
        %1591 = vadd.xlane.f32.xlu0 %v1590
        %v1592 = vpop.xlane.xlu0 %1591
        %v1593 = vld [vmem:[#allocation2] sm:$0x1]
        %s1594 = vtos %v1593
        %v1595 = vstv %s1594
        %v1596 = vadd.f32 %v1592, %v1595
        %v1598 = vlaneseq
        %v1599 = vand.u32 %v1598, 127
        %v1600 = vlaneseq
        %v1601 = vshrl.u32 %v1600, 7
        %v1602 = vsub.s32 %v1599, %v1601
        %v1603 = vrot.slane %v1596, %v1602
        %vm1605 = vcmask 57344
        %1606 = vst.msk [vmem:[%s430] sm:$0x1] %vm1605, %v1603
        %s1607 = sand.u32 %s259, 1
        %s1608 = scalar_lea.sflag [#allocation5], %s1607
        %s1609 = sand.u32 %s259, 1
        %s1610 = scalar_lea.vmem [#allocation11], %s1609
        // Predicated region
        $region77: #{tpu_custom_call.1} parent=59 // pred_check
          %p1611 = pneg %p269
        $region78: #{tpu_custom_call.1} parent=59 // pred_check_branch
          %1613 = sbr.rel (%p1611) target = $region80
        $region79: #{tpu_custom_call.1} parent=59 // pred_region
          %s1615 = ssub.s32 16, 16
          %1616 = vsyncadd %s1608, %s1615
          %s1617 = smul.addr %s31, 16
          %s1618 = scalar_lea.hbm %s10, %s1617
          %s1620 = sshll.u32 %s1610, 4
          %s1621 = int_to_ptr.vmem [resolvable:$true] %s1620
          %1623 = dma.vmem_to_hbm [thread:$0]  %s1621, 16, %s1618, %s1608
        $region80: #{tpu_custom_call.1} parent=59 // pred_fallthru
          _
      $region60: #{tpu_custom_call.1} parent=5 // pred_fallthru
        _
      %p1624 = scmp.le.s32.totalorder 2, %s26
      // Predicated region
      $region81: #{tpu_custom_call.1} parent=5 // pred_check
        %p1625 = pneg %p1624
      $region82: #{tpu_custom_call.1} parent=5 // pred_check_branch
        %1627 = sbr.rel (%p1625) target = $region84
      $region83: #{tpu_custom_call.1} parent=5 // pred_region
        %s1628 = ssub.s32 %s26, 2
        // Predicated region
        $region85: #{tpu_custom_call.1} parent=83 // pred_check
          %p1629 = pneg %p275
        $region86: #{tpu_custom_call.1} parent=83 // pred_check_branch
          %1631 = sbr.rel (%p1629) target = $region88
        $region87: #{tpu_custom_call.1} parent=83 // pred_region
          %s1632 = sand.u32 %s260, 1
          %s1633 = scalar_lea.sflag [#allocation5], %s1632
          %s1634 = sand.u32 %s260, 1
          %s1635 = scalar_lea.vmem [#allocation11], %s1634
          %1636 = dma.done %s1633, 16
        $region88: #{tpu_custom_call.1} parent=83 // pred_fallthru
          _
      $region84: #{tpu_custom_call.1} parent=5 // pred_fallthru
        _
    $region6: #{tpu_custom_call.1} parent=1 // loop_footer
      %s30 = sadd.s32 1, %s26
    $region7: #{tpu_custom_call.1} parent=1 // loop_footer_branch
      %25 = sbr.rel target = $region3
    $region8: #{tpu_custom_call.1} parent=1 // loop_exit
      _
    %1637 = vsyncpa [#allocation4], 1
    %s1638 = scalar_lea.sflag [#allocation4], 1
    %1639 = vsyncpa %s1638, 1
    %1640 = vsyncpa [#allocation7], 1
    %1641 = vsyncpa [#allocation10], 1
    %1642 = vsyncpa [#allocation5], 1
    %s1643 = scalar_lea.sflag [#allocation5], 1
    %1644 = vsyncpa %s1643, 1

</llo_original>
